<compile_context>
chip_gen: v5e
topology: v5e:2x2
jax: 0.10.0
libtpu: 0.0.40
codegen_flags: <defaults>
</compile_context>

<pallas_src>
import math

import jax
import jax.numpy as jnp
from jax.experimental import pallas as pl
from jax.experimental.pallas import tpu as pltpu

# ---------------------------------------------------------------------------
# Small synthetic sizes consistent with the module's forward pass.
# ---------------------------------------------------------------------------
B = 2                    # batch size
S = 8                    # sequence length (power of two -> shift-based seq id)
H = 32                   # bert_dim
FFN = 64                 # feed-forward width of the synthetic encoder
NUM_CHOICES = 4          # a / b / c / d
VOCAB = 100
TYPE_VOCAB = 2

N = NUM_CHOICES * B      # number of sequences processed in one kernel call
NS = N * S               # total token rows

S_SHIFT = int(math.log2(S))
assert (1 << S_SHIFT) == S, "S must be a power of two for the block-diag mask"

# rows of the packed (VEC_ROWS, 128) f32 bias/LayerNorm slab
ROW_LN_E_G, ROW_LN_E_B = 0, 1
ROW_BQKV = 2
ROW_BO = 3
ROW_LN1_G, ROW_LN1_B = 4, 5
ROW_B1 = 6
ROW_B2 = 7
ROW_LN2_G, ROW_LN2_B = 8, 9
ROW_BP = 10
ROW_DENSE_B = 11
ROW_DENSE2_B = 12
VEC_ROWS = 16

# lane-dense packed output slab (one full f32 vreg tile)
OUT_ROWS, OUT_COLS = 8, 128
assert OUT_ROWS >= 2 * B and OUT_COLS >= 4


# ---------------------------------------------------------------------------
# Fused kernel: embeddings + encoder + pooler + classification head.
# ---------------------------------------------------------------------------
def fused_bert_kernel(word_ids_ref, seg_ids_ref,
                      word_emb_ref, type_emb_ref, pos_emb_ref,
                      wqkv_ref, wo_ref, w1_ref, w2_ref, wp_ref,
                      dense_w_ref, dense2_w_ref, vec_ref,
                      out_ref):
    f32, bf16 = jnp.float32, jnp.bfloat16

    def vec(row, width):                                     # (1, width) f32 slice
        return vec_ref[row:row + 1, 0:width]

    def ln(x, g_row, b_row, eps=1e-12):
        mu = jnp.mean(x, axis=-1, keepdims=True)
        var = jnp.mean(jnp.square(x - mu), axis=-1, keepdims=True)
        return (x - mu) * jax.lax.rsqrt(var + eps) * vec(g_row, H) + vec(b_row, H)

    def bdot(x, w_ref, bias_row, bias_width):                # bf16 MXU, f32 acc
        return (jnp.dot(x.astype(bf16), w_ref[...],
                        preferred_element_type=f32) + vec(bias_row, bias_width))

    def softmax_eup(x):                                      # divide via EUP recip
        m = jnp.max(x, axis=-1, keepdims=True)
        e = jnp.exp(x - m)
        return e * pl.reciprocal(jnp.sum(e, axis=-1, keepdims=True), approx=True)

    # ---- embedding lookup via in-kernel one-hot matmuls (all sequences) ----
    wids = word_ids_ref[...]                                 # (NS, 1) int32
    sids = seg_ids_ref[...]                                  # (NS, 1) int32
    word_oh = (jax.lax.broadcasted_iota(jnp.int32, (NS, VOCAB), 1)
               == wids).astype(f32)                          # (NS, VOCAB)
    type_oh = (jax.lax.broadcasted_iota(jnp.int32, (NS, TYPE_VOCAB), 1)
               == sids).astype(f32)                          # (NS, TYPE_VOCAB)
    x = (jnp.dot(word_oh, word_emb_ref[...], preferred_element_type=f32) +
         jnp.dot(type_oh, type_emb_ref[...], preferred_element_type=f32) +
         pos_emb_ref[...])                                   # (NS, H) f32
    x = ln(x, ROW_LN_E_G, ROW_LN_E_B)

    # ---- fused single-head self-attention over all N sequences at once ----
    qkv = bdot(x, wqkv_ref, ROW_BQKV, 3 * H)                 # (NS, 3H) f32
    q = qkv[:, 0:H]
    k = qkv[:, H:2 * H]
    v = qkv[:, 2 * H:3 * H]
    scores = jax.lax.dot_general(
        q.astype(bf16), k.astype(bf16),
        dimension_numbers=(((1,), (1,)), ((), ())),
        preferred_element_type=f32) * (1.0 / math.sqrt(H))   # (NS, NS)
    r_seq = jnp.right_shift(
        jax.lax.broadcasted_iota(jnp.int32, (NS, NS), 0), S_SHIFT)
    c_seq = jnp.right_shift(
        jax.lax.broadcasted_iota(jnp.int32, (NS, NS), 1), S_SHIFT)
    scores = jnp.where(r_seq == c_seq, scores, -1e30)        # block-diagonal mask
    attn = softmax_eup(scores)                               # (NS, NS)
    ctx = jnp.dot(attn.astype(bf16), v.astype(bf16),
                  preferred_element_type=f32)                # (NS, H)
    att_out = bdot(ctx, wo_ref, ROW_BO, H)
    x = ln(x + att_out, ROW_LN1_G, ROW_LN1_B)

    # ------------------------------ feed-forward ---------------------------
    # TODO(synk): HF/PyTorch BERT default is the exact erf GELU; tanh approx kept.
    h = jax.nn.gelu(bdot(x, w1_ref, ROW_B1, FFN), approximate=True)
    x = ln(x + bdot(h, w2_ref, ROW_B2, H), ROW_LN2_G, ROW_LN2_B)

    # ---------------- pooler: tanh(dense(CLS rows)) -------------------------
    cls_sel = (jax.lax.broadcasted_iota(jnp.int32, (N, NS), 1) ==
               S * jax.lax.broadcasted_iota(jnp.int32, (N, NS), 0)).astype(f32)
    cls = jnp.dot(cls_sel, x, preferred_element_type=f32)    # (N, H)
    pooled = jnp.tanh(bdot(cls, wp_ref, ROW_BP, H))          # (N, H)

    # -------- classification head (dropout == identity, eval mode) ---------
    logits = jnp.dot(pooled, dense_w_ref[...],
                     preferred_element_type=f32) + vec(ROW_DENSE_B, 2)   # (N, 2)
    sm = jax.nn.softmax(logits, axis=-1)     # per-choice nn.Softmax(dim=1)

    # dense2(torch.cat((a_, b_, c_, d_), dim=-1)) as a sum of per-choice matmuls
    d2w = dense2_w_ref[...]                                  # (8, 4) f32
    cat = vec(ROW_DENSE2_B, 4)                               # (1, 4) bias
    for c in range(NUM_CHOICES):
        cat = cat + jnp.dot(sm[c * B:(c + 1) * B, :],
                            d2w[2 * c:2 * c + 2, :],
                            preferred_element_type=f32)      # (B, 4)
    cat_sm = jax.nn.softmax(cat, axis=-1)                    # nn.Softmax(dim=1)

    # -------- lane-dense packed output: one (8, 128) f32 vreg tile ----------
    out_ref[...] = jnp.zeros((OUT_ROWS, OUT_COLS), f32)
    out_ref[0:2 * B, 0:4] = jnp.concatenate([cat, cat_sm], axis=0)


# ---------------------------------------------------------------------------
# Parameters (deterministic synthetic init) and forward glue.
# ---------------------------------------------------------------------------
def init_params(key):
    ks = jax.random.split(key, 12)

    def w(k, shape):
        return jax.random.normal(k, shape, jnp.float32) * 0.02

    wq, wk, wv = w(ks[3], (H, H)), w(ks[4], (H, H)), w(ks[5], (H, H))

    vec_slab = jnp.zeros((VEC_ROWS, 128), jnp.float32)
    for r in (ROW_LN_E_G, ROW_LN1_G, ROW_LN2_G):             # LayerNorm gammas = 1
        vec_slab = vec_slab.at[r, 0:H].set(1.0)
    # all biases / LayerNorm betas are zero (rows stay zero)

    pos_emb = w(ks[2], (S, H))
    return {
        "word_emb": w(ks[0], (VOCAB, H)),
        "type_emb": w(ks[1], (TYPE_VOCAB, H)),
        "pos_emb_tiled": jnp.tile(pos_emb, (N, 1)),          # (NS, H)
        "wqkv": jnp.concatenate([wq, wk, wv], axis=1).astype(jnp.bfloat16),
        "wo": w(ks[6], (H, H)).astype(jnp.bfloat16),
        "w1": w(ks[7], (H, FFN)).astype(jnp.bfloat16),
        "w2": w(ks[8], (FFN, H)).astype(jnp.bfloat16),
        "wp": w(ks[9], (H, H)).astype(jnp.bfloat16),
        "dense_w": w(ks[10], (H, 2)),                        # nn.Linear(bert_dim, 2)
        "dense2_w": w(ks[11], (8, 4)),                       # nn.Linear(8, 4)
        "vec_slab": vec_slab,
    }


def bert_forward(inputs, params):
    """inputs: [a_idx, a_seg, b_idx, b_seg, c_idx, c_seg, d_idx, d_seg], each (B, S)."""
    word_ids = jnp.concatenate([inputs[2 * c] for c in range(NUM_CHOICES)],
                               axis=0).reshape(NS, 1).astype(jnp.int32)
    seg_ids = jnp.concatenate([inputs[2 * c + 1] for c in range(NUM_CHOICES)],
                              axis=0).reshape(NS, 1).astype(jnp.int32)

    vmem = pl.BlockSpec(memory_space=pltpu.MemorySpace.VMEM)
    out = pl.pallas_call(
        fused_bert_kernel,
        out_shape=jax.ShapeDtypeStruct((OUT_ROWS, OUT_COLS), jnp.float32),
        in_specs=[vmem] * 13,
        out_specs=vmem,
    )(word_ids, seg_ids,
      params["word_emb"], params["type_emb"], params["pos_emb_tiled"],
      params["wqkv"], params["wo"], params["w1"], params["w2"], params["wp"],
      params["dense_w"], params["dense2_w"], params["vec_slab"])

    cat = out[0:B, 0:4]
    softmax = out[B:2 * B, 0:4]
    return cat, softmax


if __name__ == "__main__":
    key = jax.random.PRNGKey(0)
    pkey, ikey = jax.random.split(key)
    params = init_params(pkey)

    iks = jax.random.split(ikey, 2 * NUM_CHOICES)
    inputs = []
    for c in range(NUM_CHOICES):
        idx = jax.random.randint(iks[2 * c], (B, S), 0, VOCAB, dtype=jnp.int32)
        seg = jax.random.randint(iks[2 * c + 1], (B, S), 0, TYPE_VOCAB,
                                 dtype=jnp.int32)
        inputs += [idx, seg]

    cat, softmax = bert_forward(inputs, params)
    jax.block_until_ready((cat, softmax))

    assert cat.shape == (B, 4) and softmax.shape == (B, 4)
    assert bool(jnp.all(jnp.isfinite(cat))) and bool(jnp.all(jnp.isfinite(softmax)))
    print("KERNEL_OK")
</pallas_src>

<mosaic_0001>
module attributes {stable_mosaic.version = 11 : i64} {
  func.func @fused_bert_kernel(%arg0: memref<64x1xi32, #tpu.memory_space<vmem>>, %arg1: memref<64x1xi32, #tpu.memory_space<vmem>>, %arg2: memref<100x32xf32, #tpu.memory_space<vmem>>, %arg3: memref<2x32xf32, #tpu.memory_space<vmem>>, %arg4: memref<64x32xf32, #tpu.memory_space<vmem>>, %arg5: memref<32x96xbf16, #tpu.memory_space<vmem>>, %arg6: memref<32x32xbf16, #tpu.memory_space<vmem>>, %arg7: memref<32x64xbf16, #tpu.memory_space<vmem>>, %arg8: memref<64x32xbf16, #tpu.memory_space<vmem>>, %arg9: memref<32x32xbf16, #tpu.memory_space<vmem>>, %arg10: memref<32x2xf32, #tpu.memory_space<vmem>>, %arg11: memref<8x4xf32, #tpu.memory_space<vmem>>, %arg12: memref<16x128xf32, #tpu.memory_space<vmem>>, %arg13: memref<8x128xf32, #tpu.memory_space<vmem>>) attributes {dimension_semantics = [], scalar_prefetch = 0 : i64, scratch_operands = 0 : i64, tpu.core_type = #tpu.core_type<tc>} {
    %c0 = arith.constant 0 : index
    %c0_0 = arith.constant 0 : index
    %0 = vector.load %arg0[%c0, %c0_0] : memref<64x1xi32, #tpu.memory_space<vmem>>, vector<64x1xi32>
    %c0_1 = arith.constant 0 : index
    %c0_2 = arith.constant 0 : index
    %1 = vector.load %arg1[%c0_1, %c0_2] : memref<64x1xi32, #tpu.memory_space<vmem>>, vector<64x1xi32>
    %2 = tpu.iota {dimensions = array<i32: 1>} : vector<64x100xi32>
    %3 = vector.broadcast %0 : vector<64x1xi32> to vector<64x100xi32>
    %4 = arith.cmpi eq, %2, %3 : vector<64x100xi32>
    %5 = arith.extui %4 : vector<64x100xi1> to vector<64x100xi32>
    %6 = arith.sitofp %5 : vector<64x100xi32> to vector<64x100xf32>
    %7 = tpu.iota {dimensions = array<i32: 1>} : vector<64x2xi32>
    %8 = vector.broadcast %1 : vector<64x1xi32> to vector<64x2xi32>
    %9 = arith.cmpi eq, %7, %8 : vector<64x2xi32>
    %10 = arith.extui %9 : vector<64x2xi1> to vector<64x2xi32>
    %11 = arith.sitofp %10 : vector<64x2xi32> to vector<64x2xf32>
    %c0_3 = arith.constant 0 : index
    %c0_4 = arith.constant 0 : index
    %12 = vector.load %arg2[%c0_3, %c0_4] : memref<100x32xf32, #tpu.memory_space<vmem>>, vector<100x32xf32>
    %cst = arith.constant dense<0.000000e+00> : vector<64x32xf32>
    %13 = tpu.matmul %6, %12, %cst {dimension_numbers = #tpu.dot_dimension_numbers<[1], [0], [0], [1], [0, 0, 1, 1], [], []>} : vector<64x100xf32>, vector<100x32xf32>, vector<64x32xf32> -> vector<64x32xf32>
    %c0_5 = arith.constant 0 : index
    %c0_6 = arith.constant 0 : index
    %14 = vector.load %arg3[%c0_5, %c0_6] : memref<2x32xf32, #tpu.memory_space<vmem>>, vector<2x32xf32>
    %cst_7 = arith.constant dense<0.000000e+00> : vector<64x32xf32>
    %15 = tpu.matmul %11, %14, %cst_7 {dimension_numbers = #tpu.dot_dimension_numbers<[1], [0], [0], [1], [0, 0, 1, 1], [], []>} : vector<64x2xf32>, vector<2x32xf32>, vector<64x32xf32> -> vector<64x32xf32>
    %16 = arith.addf %13, %15 : vector<64x32xf32>
    %c0_8 = arith.constant 0 : index
    %c0_9 = arith.constant 0 : index
    %17 = vector.load %arg4[%c0_8, %c0_9] : memref<64x32xf32, #tpu.memory_space<vmem>>, vector<64x32xf32>
    %18 = arith.addf %16, %17 : vector<64x32xf32>
    %cst_10 = arith.constant dense<0.000000e+00> : vector<64xf32>
    %19 = vector.multi_reduction <add>, %18, %cst_10 [1] : vector<64x32xf32> to vector<64xf32>
    %20 = vector.shape_cast %19 : vector<64xf32> to vector<64x1xf32>
    %cst_11 = arith.constant 3.200000e+01 : f32
    %21 = vector.broadcast %cst_11 : f32 to vector<64x1xf32>
    %22 = arith.divf %20, %21 : vector<64x1xf32>
    %23 = vector.broadcast %22 : vector<64x1xf32> to vector<64x32xf32>
    %24 = arith.subf %18, %23 : vector<64x32xf32>
    %25 = arith.mulf %24, %24 : vector<64x32xf32>
    %cst_12 = arith.constant dense<0.000000e+00> : vector<64xf32>
    %26 = vector.multi_reduction <add>, %25, %cst_12 [1] : vector<64x32xf32> to vector<64xf32>
    %27 = vector.shape_cast %26 : vector<64xf32> to vector<64x1xf32>
    %cst_13 = arith.constant 3.200000e+01 : f32
    %28 = vector.broadcast %cst_13 : f32 to vector<64x1xf32>
    %29 = arith.divf %27, %28 : vector<64x1xf32>
    %30 = vector.broadcast %22 : vector<64x1xf32> to vector<64x32xf32>
    %31 = arith.subf %18, %30 : vector<64x32xf32>
    %cst_14 = arith.constant 9.99999996E-13 : f32
    %32 = vector.broadcast %cst_14 : f32 to vector<64x1xf32>
    %33 = arith.addf %29, %32 : vector<64x1xf32>
    %34 = math.rsqrt %33 : vector<64x1xf32>
    %35 = vector.broadcast %34 : vector<64x1xf32> to vector<64x32xf32>
    %36 = arith.mulf %31, %35 : vector<64x32xf32>
    %c0_15 = arith.constant 0 : index
    %c0_16 = arith.constant 0 : index
    %37 = vector.load %arg12[%c0_15, %c0_16] : memref<16x128xf32, #tpu.memory_space<vmem>>, vector<1x32xf32>
    %38 = vector.broadcast %37 : vector<1x32xf32> to vector<64x32xf32>
    %39 = arith.mulf %36, %38 : vector<64x32xf32>
    %c1 = arith.constant 1 : index
    %c0_17 = arith.constant 0 : index
    %40 = vector.load %arg12[%c1, %c0_17] : memref<16x128xf32, #tpu.memory_space<vmem>>, vector<1x32xf32>
    %41 = vector.broadcast %40 : vector<1x32xf32> to vector<64x32xf32>
    %42 = arith.addf %39, %41 : vector<64x32xf32>
    %43 = arith.truncf %42 : vector<64x32xf32> to vector<64x32xbf16>
    %c0_18 = arith.constant 0 : index
    %c0_19 = arith.constant 0 : index
    %44 = vector.load %arg5[%c0_18, %c0_19] : memref<32x96xbf16, #tpu.memory_space<vmem>>, vector<32x96xbf16>
    %cst_20 = arith.constant dense<0.000000e+00> : vector<64x96xf32>
    %45 = tpu.matmul %43, %44, %cst_20 {dimension_numbers = #tpu.dot_dimension_numbers<[1], [0], [0], [1], [0, 0, 1, 1], [], []>} : vector<64x32xbf16>, vector<32x96xbf16>, vector<64x96xf32> -> vector<64x96xf32>
    %c2 = arith.constant 2 : index
    %c0_21 = arith.constant 0 : index
    %46 = vector.load %arg12[%c2, %c0_21] : memref<16x128xf32, #tpu.memory_space<vmem>>, vector<1x96xf32>
    %47 = vector.broadcast %46 : vector<1x96xf32> to vector<64x96xf32>
    %48 = arith.addf %45, %47 : vector<64x96xf32>
    %49 = vector.extract_strided_slice %48 {offsets = [0, 0], sizes = [64, 32], strides = [1, 1]} : vector<64x96xf32> to vector<64x32xf32>
    %50 = vector.extract_strided_slice %48 {offsets = [0, 32], sizes = [64, 32], strides = [1, 1]} : vector<64x96xf32> to vector<64x32xf32>
    %51 = vector.extract_strided_slice %48 {offsets = [0, 64], sizes = [64, 32], strides = [1, 1]} : vector<64x96xf32> to vector<64x32xf32>
    %52 = arith.truncf %49 : vector<64x32xf32> to vector<64x32xbf16>
    %53 = arith.truncf %50 : vector<64x32xf32> to vector<64x32xbf16>
    %cst_22 = arith.constant dense<0.000000e+00> : vector<64x64xf32>
    %54 = tpu.matmul %52, %53, %cst_22 {dimension_numbers = #tpu.dot_dimension_numbers<[1], [1], [0], [0], [0, 0, 1, 0], [], []>} : vector<64x32xbf16>, vector<64x32xbf16>, vector<64x64xf32> -> vector<64x64xf32>
    %cst_23 = arith.constant 0.176776692 : f32
    %55 = vector.broadcast %cst_23 : f32 to vector<64x64xf32>
    %56 = arith.mulf %54, %55 : vector<64x64xf32>
    %57 = tpu.iota {dimensions = array<i32: 0>} : vector<64x64xi32>
    %c3_i32 = arith.constant 3 : i32
    %58 = vector.broadcast %c3_i32 : i32 to vector<64x64xi32>
    %59 = arith.shrsi %57, %58 : vector<64x64xi32>
    %60 = tpu.iota {dimensions = array<i32: 1>} : vector<64x64xi32>
    %c3_i32_24 = arith.constant 3 : i32
    %61 = vector.broadcast %c3_i32_24 : i32 to vector<64x64xi32>
    %62 = arith.shrsi %60, %61 : vector<64x64xi32>
    %63 = arith.cmpi eq, %59, %62 : vector<64x64xi32>
    %cst_25 = arith.constant -1.000000e+30 : f32
    %64 = vector.broadcast %cst_25 : f32 to vector<64x64xf32>
    %65 = arith.select %63, %56, %64 : vector<64x64xi1>, vector<64x64xf32>
    %cst_26 = arith.constant dense<0xFF800000> : vector<64xf32>
    %66 = vector.multi_reduction <maximumf>, %65, %cst_26 [1] : vector<64x64xf32> to vector<64xf32>
    %67 = vector.shape_cast %66 : vector<64xf32> to vector<64x1xf32>
    %68 = vector.broadcast %67 : vector<64x1xf32> to vector<64x64xf32>
    %69 = arith.subf %65, %68 : vector<64x64xf32>
    %70 = math.exp %69 : vector<64x64xf32>
    %cst_27 = arith.constant dense<0.000000e+00> : vector<64xf32>
    %71 = vector.multi_reduction <add>, %70, %cst_27 [1] : vector<64x64xf32> to vector<64xf32>
    %72 = vector.shape_cast %71 : vector<64xf32> to vector<64x1xf32>
    %73 = tpu.reciprocal %72 {approx = true} : vector<64x1xf32> -> vector<64x1xf32>
    %74 = vector.broadcast %73 : vector<64x1xf32> to vector<64x64xf32>
    %75 = arith.mulf %70, %74 : vector<64x64xf32>
    %76 = arith.truncf %75 : vector<64x64xf32> to vector<64x64xbf16>
    %77 = arith.truncf %51 : vector<64x32xf32> to vector<64x32xbf16>
    %cst_28 = arith.constant dense<0.000000e+00> : vector<64x32xf32>
    %78 = tpu.matmul %76, %77, %cst_28 {dimension_numbers = #tpu.dot_dimension_numbers<[1], [0], [0], [1], [0, 0, 1, 1], [], []>} : vector<64x64xbf16>, vector<64x32xbf16>, vector<64x32xf32> -> vector<64x32xf32>
    %79 = arith.truncf %78 : vector<64x32xf32> to vector<64x32xbf16>
    %c0_29 = arith.constant 0 : index
    %c0_30 = arith.constant 0 : index
    %80 = vector.load %arg6[%c0_29, %c0_30] : memref<32x32xbf16, #tpu.memory_space<vmem>>, vector<32x32xbf16>
    %cst_31 = arith.constant dense<0.000000e+00> : vector<64x32xf32>
    %81 = tpu.matmul %79, %80, %cst_31 {dimension_numbers = #tpu.dot_dimension_numbers<[1], [0], [0], [1], [0, 0, 1, 1], [], []>} : vector<64x32xbf16>, vector<32x32xbf16>, vector<64x32xf32> -> vector<64x32xf32>
    %c3 = arith.constant 3 : index
    %c0_32 = arith.constant 0 : index
    %82 = vector.load %arg12[%c3, %c0_32] : memref<16x128xf32, #tpu.memory_space<vmem>>, vector<1x32xf32>
    %83 = vector.broadcast %82 : vector<1x32xf32> to vector<64x32xf32>
    %84 = arith.addf %81, %83 : vector<64x32xf32>
    %85 = arith.addf %42, %84 : vector<64x32xf32>
    %cst_33 = arith.constant dense<0.000000e+00> : vector<64xf32>
    %86 = vector.multi_reduction <add>, %85, %cst_33 [1] : vector<64x32xf32> to vector<64xf32>
    %87 = vector.shape_cast %86 : vector<64xf32> to vector<64x1xf32>
    %cst_34 = arith.constant 3.200000e+01 : f32
    %88 = vector.broadcast %cst_34 : f32 to vector<64x1xf32>
    %89 = arith.divf %87, %88 : vector<64x1xf32>
    %90 = vector.broadcast %89 : vector<64x1xf32> to vector<64x32xf32>
    %91 = arith.subf %85, %90 : vector<64x32xf32>
    %92 = arith.mulf %91, %91 : vector<64x32xf32>
    %cst_35 = arith.constant dense<0.000000e+00> : vector<64xf32>
    %93 = vector.multi_reduction <add>, %92, %cst_35 [1] : vector<64x32xf32> to vector<64xf32>
    %94 = vector.shape_cast %93 : vector<64xf32> to vector<64x1xf32>
    %cst_36 = arith.constant 3.200000e+01 : f32
    %95 = vector.broadcast %cst_36 : f32 to vector<64x1xf32>
    %96 = arith.divf %94, %95 : vector<64x1xf32>
    %97 = vector.broadcast %89 : vector<64x1xf32> to vector<64x32xf32>
    %98 = arith.subf %85, %97 : vector<64x32xf32>
    %cst_37 = arith.constant 9.99999996E-13 : f32
    %99 = vector.broadcast %cst_37 : f32 to vector<64x1xf32>
    %100 = arith.addf %96, %99 : vector<64x1xf32>
    %101 = math.rsqrt %100 : vector<64x1xf32>
    %102 = vector.broadcast %101 : vector<64x1xf32> to vector<64x32xf32>
    %103 = arith.mulf %98, %102 : vector<64x32xf32>
    %c4 = arith.constant 4 : index
    %c0_38 = arith.constant 0 : index
    %104 = vector.load %arg12[%c4, %c0_38] : memref<16x128xf32, #tpu.memory_space<vmem>>, vector<1x32xf32>
    %105 = vector.broadcast %104 : vector<1x32xf32> to vector<64x32xf32>
    %106 = arith.mulf %103, %105 : vector<64x32xf32>
    %c5 = arith.constant 5 : index
    %c0_39 = arith.constant 0 : index
    %107 = vector.load %arg12[%c5, %c0_39] : memref<16x128xf32, #tpu.memory_space<vmem>>, vector<1x32xf32>
    %108 = vector.broadcast %107 : vector<1x32xf32> to vector<64x32xf32>
    %109 = arith.addf %106, %108 : vector<64x32xf32>
    %110 = arith.truncf %109 : vector<64x32xf32> to vector<64x32xbf16>
    %c0_40 = arith.constant 0 : index
    %c0_41 = arith.constant 0 : index
    %111 = vector.load %arg7[%c0_40, %c0_41] : memref<32x64xbf16, #tpu.memory_space<vmem>>, vector<32x64xbf16>
    %cst_42 = arith.constant dense<0.000000e+00> : vector<64x64xf32>
    %112 = tpu.matmul %110, %111, %cst_42 {dimension_numbers = #tpu.dot_dimension_numbers<[1], [0], [0], [1], [0, 0, 1, 1], [], []>} : vector<64x32xbf16>, vector<32x64xbf16>, vector<64x64xf32> -> vector<64x64xf32>
    %c6 = arith.constant 6 : index
    %c0_43 = arith.constant 0 : index
    %113 = vector.load %arg12[%c6, %c0_43] : memref<16x128xf32, #tpu.memory_space<vmem>>, vector<1x64xf32>
    %114 = vector.broadcast %113 : vector<1x64xf32> to vector<64x64xf32>
    %115 = arith.addf %112, %114 : vector<64x64xf32>
    %116 = arith.mulf %115, %115 : vector<64x64xf32>
    %117 = arith.mulf %115, %116 : vector<64x64xf32>
    %cst_44 = arith.constant 4.471500e-02 : f32
    %118 = vector.broadcast %cst_44 : f32 to vector<64x64xf32>
    %119 = arith.mulf %118, %117 : vector<64x64xf32>
    %120 = arith.addf %115, %119 : vector<64x64xf32>
    %cst_45 = arith.constant 0.797884583 : f32
    %121 = vector.broadcast %cst_45 : f32 to vector<64x64xf32>
    %122 = arith.mulf %121, %120 : vector<64x64xf32>
    %123 = math.tanh %122 : vector<64x64xf32>
    %cst_46 = arith.constant 1.000000e+00 : f32
    %124 = vector.broadcast %cst_46 : f32 to vector<64x64xf32>
    %125 = arith.addf %124, %123 : vector<64x64xf32>
    %cst_47 = arith.constant 5.000000e-01 : f32
    %126 = vector.broadcast %cst_47 : f32 to vector<64x64xf32>
    %127 = arith.mulf %126, %125 : vector<64x64xf32>
    %128 = arith.mulf %115, %127 : vector<64x64xf32>
    %129 = arith.truncf %128 : vector<64x64xf32> to vector<64x64xbf16>
    %c0_48 = arith.constant 0 : index
    %c0_49 = arith.constant 0 : index
    %130 = vector.load %arg8[%c0_48, %c0_49] : memref<64x32xbf16, #tpu.memory_space<vmem>>, vector<64x32xbf16>
    %cst_50 = arith.constant dense<0.000000e+00> : vector<64x32xf32>
    %131 = tpu.matmul %129, %130, %cst_50 {dimension_numbers = #tpu.dot_dimension_numbers<[1], [0], [0], [1], [0, 0, 1, 1], [], []>} : vector<64x64xbf16>, vector<64x32xbf16>, vector<64x32xf32> -> vector<64x32xf32>
    %c7 = arith.constant 7 : index
    %c0_51 = arith.constant 0 : index
    %132 = vector.load %arg12[%c7, %c0_51] : memref<16x128xf32, #tpu.memory_space<vmem>>, vector<1x32xf32>
    %133 = vector.broadcast %132 : vector<1x32xf32> to vector<64x32xf32>
    %134 = arith.addf %131, %133 : vector<64x32xf32>
    %135 = arith.addf %109, %134 : vector<64x32xf32>
    %cst_52 = arith.constant dense<0.000000e+00> : vector<64xf32>
    %136 = vector.multi_reduction <add>, %135, %cst_52 [1] : vector<64x32xf32> to vector<64xf32>
    %137 = vector.shape_cast %136 : vector<64xf32> to vector<64x1xf32>
    %cst_53 = arith.constant 3.200000e+01 : f32
    %138 = vector.broadcast %cst_53 : f32 to vector<64x1xf32>
    %139 = arith.divf %137, %138 : vector<64x1xf32>
    %140 = vector.broadcast %139 : vector<64x1xf32> to vector<64x32xf32>
    %141 = arith.subf %135, %140 : vector<64x32xf32>
    %142 = arith.mulf %141, %141 : vector<64x32xf32>
    %cst_54 = arith.constant dense<0.000000e+00> : vector<64xf32>
    %143 = vector.multi_reduction <add>, %142, %cst_54 [1] : vector<64x32xf32> to vector<64xf32>
    %144 = vector.shape_cast %143 : vector<64xf32> to vector<64x1xf32>
    %cst_55 = arith.constant 3.200000e+01 : f32
    %145 = vector.broadcast %cst_55 : f32 to vector<64x1xf32>
    %146 = arith.divf %144, %145 : vector<64x1xf32>
    %147 = vector.broadcast %139 : vector<64x1xf32> to vector<64x32xf32>
    %148 = arith.subf %135, %147 : vector<64x32xf32>
    %cst_56 = arith.constant 9.99999996E-13 : f32
    %149 = vector.broadcast %cst_56 : f32 to vector<64x1xf32>
    %150 = arith.addf %146, %149 : vector<64x1xf32>
    %151 = math.rsqrt %150 : vector<64x1xf32>
    %152 = vector.broadcast %151 : vector<64x1xf32> to vector<64x32xf32>
    %153 = arith.mulf %148, %152 : vector<64x32xf32>
    %c8 = arith.constant 8 : index
    %c0_57 = arith.constant 0 : index
    %154 = vector.load %arg12[%c8, %c0_57] : memref<16x128xf32, #tpu.memory_space<vmem>>, vector<1x32xf32>
    %155 = vector.broadcast %154 : vector<1x32xf32> to vector<64x32xf32>
    %156 = arith.mulf %153, %155 : vector<64x32xf32>
    %c9 = arith.constant 9 : index
    %c0_58 = arith.constant 0 : index
    %157 = vector.load %arg12[%c9, %c0_58] : memref<16x128xf32, #tpu.memory_space<vmem>>, vector<1x32xf32>
    %158 = vector.broadcast %157 : vector<1x32xf32> to vector<64x32xf32>
    %159 = arith.addf %156, %158 : vector<64x32xf32>
    %160 = tpu.iota {dimensions = array<i32: 1>} : vector<8x64xi32>
    %161 = tpu.iota {dimensions = array<i32: 0>} : vector<8x64xi32>
    %c8_i32 = arith.constant 8 : i32
    %162 = vector.broadcast %c8_i32 : i32 to vector<8x64xi32>
    %163 = arith.muli %162, %161 : vector<8x64xi32>
    %164 = arith.cmpi eq, %160, %163 : vector<8x64xi32>
    %165 = arith.extui %164 : vector<8x64xi1> to vector<8x64xi32>
    %166 = arith.sitofp %165 : vector<8x64xi32> to vector<8x64xf32>
    %cst_59 = arith.constant dense<0.000000e+00> : vector<8x32xf32>
    %167 = tpu.matmul %166, %159, %cst_59 {dimension_numbers = #tpu.dot_dimension_numbers<[1], [0], [0], [1], [0, 0, 1, 1], [], []>} : vector<8x64xf32>, vector<64x32xf32>, vector<8x32xf32> -> vector<8x32xf32>
    %168 = arith.truncf %167 : vector<8x32xf32> to vector<8x32xbf16>
    %c0_60 = arith.constant 0 : index
    %c0_61 = arith.constant 0 : index
    %169 = vector.load %arg9[%c0_60, %c0_61] : memref<32x32xbf16, #tpu.memory_space<vmem>>, vector<32x32xbf16>
    %cst_62 = arith.constant dense<0.000000e+00> : vector<8x32xf32>
    %170 = tpu.matmul %168, %169, %cst_62 {dimension_numbers = #tpu.dot_dimension_numbers<[1], [0], [0], [1], [0, 0, 1, 1], [], []>} : vector<8x32xbf16>, vector<32x32xbf16>, vector<8x32xf32> -> vector<8x32xf32>
    %c10 = arith.constant 10 : index
    %c0_63 = arith.constant 0 : index
    %171 = vector.load %arg12[%c10, %c0_63] : memref<16x128xf32, #tpu.memory_space<vmem>>, vector<1x32xf32>
    %172 = vector.broadcast %171 : vector<1x32xf32> to vector<8x32xf32>
    %173 = arith.addf %170, %172 : vector<8x32xf32>
    %174 = math.tanh %173 : vector<8x32xf32>
    %c0_64 = arith.constant 0 : index
    %c0_65 = arith.constant 0 : index
    %175 = vector.load %arg10[%c0_64, %c0_65] : memref<32x2xf32, #tpu.memory_space<vmem>>, vector<32x2xf32>
    %cst_66 = arith.constant dense<0.000000e+00> : vector<8x2xf32>
    %176 = tpu.matmul %174, %175, %cst_66 {dimension_numbers = #tpu.dot_dimension_numbers<[1], [0], [0], [1], [0, 0, 1, 1], [], []>} : vector<8x32xf32>, vector<32x2xf32>, vector<8x2xf32> -> vector<8x2xf32>
    %c11 = arith.constant 11 : index
    %c0_67 = arith.constant 0 : index
    %177 = vector.load %arg12[%c11, %c0_67] : memref<16x128xf32, #tpu.memory_space<vmem>>, vector<1x2xf32>
    %178 = vector.broadcast %177 : vector<1x2xf32> to vector<8x2xf32>
    %179 = arith.addf %176, %178 : vector<8x2xf32>
    %cst_68 = arith.constant dense<0xFF800000> : vector<8xf32>
    %180 = vector.multi_reduction <maximumf>, %179, %cst_68 [1] : vector<8x2xf32> to vector<8xf32>
    %cst_69 = arith.constant 0xFF800000 : f32
    %181 = vector.broadcast %cst_69 : f32 to vector<8xf32>
    %182 = arith.maximumf %181, %180 : vector<8xf32>
    %183 = vector.shape_cast %182 : vector<8xf32> to vector<8x1xf32>
    %184 = vector.broadcast %183 : vector<8x1xf32> to vector<8x2xf32>
    %185 = arith.subf %179, %184 : vector<8x2xf32>
    %186 = math.exp %185 : vector<8x2xf32>
    %cst_70 = arith.constant dense<0.000000e+00> : vector<8xf32>
    %187 = vector.multi_reduction <add>, %186, %cst_70 [1] : vector<8x2xf32> to vector<8xf32>
    %188 = vector.shape_cast %187 : vector<8xf32> to vector<8x1xf32>
    %189 = vector.broadcast %188 : vector<8x1xf32> to vector<8x2xf32>
    %190 = arith.divf %186, %189 : vector<8x2xf32>
    %c0_71 = arith.constant 0 : index
    %c0_72 = arith.constant 0 : index
    %191 = vector.load %arg11[%c0_71, %c0_72] : memref<8x4xf32, #tpu.memory_space<vmem>>, vector<8x4xf32>
    %c12 = arith.constant 12 : index
    %c0_73 = arith.constant 0 : index
    %192 = vector.load %arg12[%c12, %c0_73] : memref<16x128xf32, #tpu.memory_space<vmem>>, vector<1x4xf32>
    %193 = vector.extract_strided_slice %190 {offsets = [0, 0], sizes = [2, 2], strides = [1, 1]} : vector<8x2xf32> to vector<2x2xf32>
    %194 = vector.extract_strided_slice %191 {offsets = [0, 0], sizes = [2, 4], strides = [1, 1]} : vector<8x4xf32> to vector<2x4xf32>
    %cst_74 = arith.constant dense<0.000000e+00> : vector<2x4xf32>
    %195 = tpu.matmul %193, %194, %cst_74 {dimension_numbers = #tpu.dot_dimension_numbers<[1], [0], [0], [1], [0, 0, 1, 1], [], []>} : vector<2x2xf32>, vector<2x4xf32>, vector<2x4xf32> -> vector<2x4xf32>
    %196 = vector.broadcast %192 : vector<1x4xf32> to vector<2x4xf32>
    %197 = arith.addf %196, %195 : vector<2x4xf32>
    %198 = vector.extract_strided_slice %190 {offsets = [2, 0], sizes = [2, 2], strides = [1, 1]} : vector<8x2xf32> to vector<2x2xf32>
    %199 = vector.extract_strided_slice %191 {offsets = [2, 0], sizes = [2, 4], strides = [1, 1]} : vector<8x4xf32> to vector<2x4xf32>
    %cst_75 = arith.constant dense<0.000000e+00> : vector<2x4xf32>
    %200 = tpu.matmul %198, %199, %cst_75 {dimension_numbers = #tpu.dot_dimension_numbers<[1], [0], [0], [1], [0, 0, 1, 1], [], []>} : vector<2x2xf32>, vector<2x4xf32>, vector<2x4xf32> -> vector<2x4xf32>
    %201 = arith.addf %197, %200 : vector<2x4xf32>
    %202 = vector.extract_strided_slice %190 {offsets = [4, 0], sizes = [2, 2], strides = [1, 1]} : vector<8x2xf32> to vector<2x2xf32>
    %203 = vector.extract_strided_slice %191 {offsets = [4, 0], sizes = [2, 4], strides = [1, 1]} : vector<8x4xf32> to vector<2x4xf32>
    %cst_76 = arith.constant dense<0.000000e+00> : vector<2x4xf32>
    %204 = tpu.matmul %202, %203, %cst_76 {dimension_numbers = #tpu.dot_dimension_numbers<[1], [0], [0], [1], [0, 0, 1, 1], [], []>} : vector<2x2xf32>, vector<2x4xf32>, vector<2x4xf32> -> vector<2x4xf32>
    %205 = arith.addf %201, %204 : vector<2x4xf32>
    %206 = vector.extract_strided_slice %190 {offsets = [6, 0], sizes = [2, 2], strides = [1, 1]} : vector<8x2xf32> to vector<2x2xf32>
    %207 = vector.extract_strided_slice %191 {offsets = [6, 0], sizes = [2, 4], strides = [1, 1]} : vector<8x4xf32> to vector<2x4xf32>
    %cst_77 = arith.constant dense<0.000000e+00> : vector<2x4xf32>
    %208 = tpu.matmul %206, %207, %cst_77 {dimension_numbers = #tpu.dot_dimension_numbers<[1], [0], [0], [1], [0, 0, 1, 1], [], []>} : vector<2x2xf32>, vector<2x4xf32>, vector<2x4xf32> -> vector<2x4xf32>
    %209 = arith.addf %205, %208 : vector<2x4xf32>
    %cst_78 = arith.constant dense<0xFF800000> : vector<2xf32>
    %210 = vector.multi_reduction <maximumf>, %209, %cst_78 [1] : vector<2x4xf32> to vector<2xf32>
    %cst_79 = arith.constant 0xFF800000 : f32
    %211 = vector.broadcast %cst_79 : f32 to vector<2xf32>
    %212 = arith.maximumf %211, %210 : vector<2xf32>
    %213 = vector.shape_cast %212 : vector<2xf32> to vector<2x1xf32>
    %214 = vector.broadcast %213 : vector<2x1xf32> to vector<2x4xf32>
    %215 = arith.subf %209, %214 : vector<2x4xf32>
    %216 = math.exp %215 : vector<2x4xf32>
    %cst_80 = arith.constant dense<0.000000e+00> : vector<2xf32>
    %217 = vector.multi_reduction <add>, %216, %cst_80 [1] : vector<2x4xf32> to vector<2xf32>
    %218 = vector.shape_cast %217 : vector<2xf32> to vector<2x1xf32>
    %219 = vector.broadcast %218 : vector<2x1xf32> to vector<2x4xf32>
    %220 = arith.divf %216, %219 : vector<2x4xf32>
    %cst_81 = arith.constant 0.000000e+00 : f32
    %221 = vector.broadcast %cst_81 : f32 to vector<8x128xf32>
    %c0_82 = arith.constant 0 : index
    %c0_83 = arith.constant 0 : index
    %222 = vector.load %arg13[%c0_82, %c0_83] : memref<8x128xf32, #tpu.memory_space<vmem>>, vector<8x128xf32>
    tpu.vector_store %arg13[%c0_82, %c0_83], %221 {strides = array<i32>} : memref<8x128xf32, #tpu.memory_space<vmem>>, vector<8x128xf32>,
    %223 = tpu.concatenate %209, %220 in 0 : vector<2x4xf32>, vector<2x4xf32> -> vector<4x4xf32>
    %c0_84 = arith.constant 0 : index
    %c0_85 = arith.constant 0 : index
    %224 = vector.load %arg13[%c0_84, %c0_85] : memref<8x128xf32, #tpu.memory_space<vmem>>, vector<4x4xf32>
    tpu.vector_store %arg13[%c0_84, %c0_85], %223 {strides = array<i32>} : memref<8x128xf32, #tpu.memory_space<vmem>>, vector<4x4xf32>,
    return
  }
}

</mosaic_0001>

<llo_original>
// kernel: tpu_custom_call.1
$region0: #{tpu_custom_call.1}
  #allocation0 [shape = 'u32[]', space=smem, size = 0x4, offset = 0x4, fixed_abs, tag = 'smem constant byte address 0x4 - core index']
  #allocation1 [shape = 'u32[72,128]{1,0:T(1,128)}', space=vmem, size = 0x9000, scoped, tag = 'internal scratch']
  %s0 = inlined_call_operand.vmem [shape: s32[64,1], index: 0, kind: input, shape index: {}]
  %s1 = inlined_call_operand.vmem [shape: s32[64,1], index: 1, kind: input, shape index: {}]
  %s2 = inlined_call_operand.vmem [shape: f32[100,32], index: 2, kind: input, shape index: {}]
  %s3 = inlined_call_operand.vmem [shape: f32[2,32], index: 3, kind: input, shape index: {}]
  %s4 = inlined_call_operand.vmem [shape: f32[64,32], index: 4, kind: input, shape index: {}]
  %s5 = inlined_call_operand.vmem [shape: bf16[32,96], index: 5, kind: input, shape index: {}]
  %s6 = inlined_call_operand.vmem [shape: bf16[32,32], index: 6, kind: input, shape index: {}]
  %s7 = inlined_call_operand.vmem [shape: bf16[32,64], index: 7, kind: input, shape index: {}]
  %s8 = inlined_call_operand.vmem [shape: bf16[64,32], index: 8, kind: input, shape index: {}]
  %s9 = inlined_call_operand.vmem [shape: bf16[32,32], index: 9, kind: input, shape index: {}]
  %s10 = inlined_call_operand.vmem [shape: f32[32,2], index: 10, kind: input, shape index: {}]
  %s11 = inlined_call_operand.vmem [shape: f32[8,4], index: 11, kind: input, shape index: {}]
  %s12 = inlined_call_operand.vmem [shape: f32[16,128], index: 12, kind: input, shape index: {}]
  %s13 = inlined_call_operand.hbm [shape: f32[8,128], index: 13, kind: output, shape index: {}]
  %s14 = sld [smem:[#allocation0]]
  $region62: #{tpu_custom_call.1} parent=0
    _
  %s16 = ssub.s32 1, %s14
  %s17 = scalar_select 0, %s16, %s14
  $region1: #{tpu_custom_call.1} parent=0
    #allocation2 [shape = 'u8[4096]{0}', space=vmem, size = 0x1000, scoped, tag = 'output window, operand 0, single buffered']
    #allocation3 [shape = 's32[1]{0}', space=sflag, size = 0x4, scoped, tag = 'scoped memory for tpu_custom_call.1']
    %18 = vsyncpa [#allocation3], 0
    // Predicated region
    $region2: #{tpu_custom_call.1} parent=1 // pred_check
      _
    $region3: #{tpu_custom_call.1} parent=1 // pred_check_branch
      %20 = sbr.rel (0) target = $region5
    $region4: #{tpu_custom_call.1} parent=1 // pred_region
      _
    $region5: #{tpu_custom_call.1} parent=1 // pred_fallthru
      _
    // Predicated region
    $region6: #{tpu_custom_call.1} parent=1 // pred_check
      _
    $region7: #{tpu_custom_call.1} parent=1 // pred_check_branch
      %22 = sbr.rel (0) target = $region9
    $region8: #{tpu_custom_call.1} parent=1 // pred_region
      _
    $region9: #{tpu_custom_call.1} parent=1 // pred_fallthru
      _
    // Predicated region
    $region10: #{tpu_custom_call.1} parent=1 // pred_check
      _
    $region11: #{tpu_custom_call.1} parent=1 // pred_check_branch
      %24 = sbr.rel (0) target = $region13
    $region12: #{tpu_custom_call.1} parent=1 // pred_region
      _
    $region13: #{tpu_custom_call.1} parent=1 // pred_fallthru
      _
    // Predicated region
    $region14: #{tpu_custom_call.1} parent=1 // pred_check
      _
    $region15: #{tpu_custom_call.1} parent=1 // pred_check_branch
      %26 = sbr.rel (0) target = $region17
    $region16: #{tpu_custom_call.1} parent=1 // pred_region
      _
    $region17: #{tpu_custom_call.1} parent=1 // pred_fallthru
      _
    // Predicated region
    $region18: #{tpu_custom_call.1} parent=1 // pred_check
      _
    $region19: #{tpu_custom_call.1} parent=1 // pred_check_branch
      %28 = sbr.rel (0) target = $region21
    $region20: #{tpu_custom_call.1} parent=1 // pred_region
      _
    $region21: #{tpu_custom_call.1} parent=1 // pred_fallthru
      _
    // Predicated region
    $region22: #{tpu_custom_call.1} parent=1 // pred_check
      _
    $region23: #{tpu_custom_call.1} parent=1 // pred_check_branch
      %30 = sbr.rel (0) target = $region25
    $region24: #{tpu_custom_call.1} parent=1 // pred_region
      _
    $region25: #{tpu_custom_call.1} parent=1 // pred_fallthru
      _
    // Predicated region
    $region26: #{tpu_custom_call.1} parent=1 // pred_check
      _
    $region27: #{tpu_custom_call.1} parent=1 // pred_check_branch
      %32 = sbr.rel (0) target = $region29
    $region28: #{tpu_custom_call.1} parent=1 // pred_region
      _
    $region29: #{tpu_custom_call.1} parent=1 // pred_fallthru
      _
    // Predicated region
    $region30: #{tpu_custom_call.1} parent=1 // pred_check
      _
    $region31: #{tpu_custom_call.1} parent=1 // pred_check_branch
      %34 = sbr.rel (0) target = $region33
    $region32: #{tpu_custom_call.1} parent=1 // pred_region
      _
    $region33: #{tpu_custom_call.1} parent=1 // pred_fallthru
      _
    // Predicated region
    $region34: #{tpu_custom_call.1} parent=1 // pred_check
      _
    $region35: #{tpu_custom_call.1} parent=1 // pred_check_branch
      %36 = sbr.rel (0) target = $region37
    $region36: #{tpu_custom_call.1} parent=1 // pred_region
      _
    $region37: #{tpu_custom_call.1} parent=1 // pred_fallthru
      _
    // Predicated region
    $region38: #{tpu_custom_call.1} parent=1 // pred_check
      _
    $region39: #{tpu_custom_call.1} parent=1 // pred_check_branch
      %38 = sbr.rel (0) target = $region41
    $region40: #{tpu_custom_call.1} parent=1 // pred_region
      _
    $region41: #{tpu_custom_call.1} parent=1 // pred_fallthru
      _
    // Predicated region
    $region42: #{tpu_custom_call.1} parent=1 // pred_check
      _
    $region43: #{tpu_custom_call.1} parent=1 // pred_check_branch
      %40 = sbr.rel (0) target = $region45
    $region44: #{tpu_custom_call.1} parent=1 // pred_region
      _
    $region45: #{tpu_custom_call.1} parent=1 // pred_fallthru
      _
    // Predicated region
    $region46: #{tpu_custom_call.1} parent=1 // pred_check
      _
    $region47: #{tpu_custom_call.1} parent=1 // pred_check_branch
      %42 = sbr.rel (0) target = $region49
    $region48: #{tpu_custom_call.1} parent=1 // pred_region
      _
    $region49: #{tpu_custom_call.1} parent=1 // pred_fallthru
      _
    // Predicated region
    $region50: #{tpu_custom_call.1} parent=1 // pred_check
      _
    $region51: #{tpu_custom_call.1} parent=1 // pred_check_branch
      %44 = sbr.rel (0) target = $region53
    $region52: #{tpu_custom_call.1} parent=1 // pred_region
      _
    $region53: #{tpu_custom_call.1} parent=1 // pred_fallthru
      _
    %v46 = vld [vmem:[%s0] sm:$0xff]
    %v47 = vld [vmem:[%s0 + $0x8] sm:$0xff]
    %v48 = vld [vmem:[%s0 + $0x10] sm:$0xff]
    %v49 = vld [vmem:[%s0 + $0x18] sm:$0xff]
    %v50 = vld [vmem:[%s0 + $0x20] sm:$0xff]
    %v51 = vld [vmem:[%s0 + $0x28] sm:$0xff]
    %v52 = vld [vmem:[%s0 + $0x30] sm:$0xff]
    %v53 = vld [vmem:[%s0 + $0x38] sm:$0xff]
    %v54 = vld [vmem:[%s1] sm:$0xff]
    %v55 = vld [vmem:[%s1 + $0x8] sm:$0xff]
    %v56 = vld [vmem:[%s1 + $0x10] sm:$0xff]
    %v57 = vld [vmem:[%s1 + $0x18] sm:$0xff]
    %v58 = vld [vmem:[%s1 + $0x20] sm:$0xff]
    %v59 = vld [vmem:[%s1 + $0x28] sm:$0xff]
    %v60 = vld [vmem:[%s1 + $0x30] sm:$0xff]
    %v61 = vld [vmem:[%s1 + $0x38] sm:$0xff]
    %v62 = vlaneseq
    %v63 = vand.u32 %v62, 127
    %64 = vset.pattern.permute.xlu0 0
    %65 = vperm.xlu0 %64, %v46
    %v66 = vpop.permute.xlu0 %65
    %67 = vset.pattern.permute.xlu0 0
    %68 = vperm.xlu0 %67, %v47
    %v69 = vpop.permute.xlu0 %68
    %70 = vset.pattern.permute.xlu0 0
    %71 = vperm.xlu0 %70, %v48
    %v72 = vpop.permute.xlu0 %71
    %73 = vset.pattern.permute.xlu0 0
    %74 = vperm.xlu0 %73, %v49
    %v75 = vpop.permute.xlu0 %74
    %76 = vset.pattern.permute.xlu0 0
    %77 = vperm.xlu0 %76, %v50
    %v78 = vpop.permute.xlu0 %77
    %79 = vset.pattern.permute.xlu0 0
    %80 = vperm.xlu0 %79, %v51
    %v81 = vpop.permute.xlu0 %80
    %82 = vset.pattern.permute.xlu0 0
    %83 = vperm.xlu0 %82, %v52
    %v84 = vpop.permute.xlu0 %83
    %85 = vset.pattern.permute.xlu0 0
    %86 = vperm.xlu0 %85, %v53
    %v87 = vpop.permute.xlu0 %86
    %vm88 = vcmp.eq.s32.totalorder %v63, %v66
    %vm89 = vcmp.eq.s32.totalorder %v63, %v69
    %vm90 = vcmp.eq.s32.totalorder %v63, %v72
    %vm91 = vcmp.eq.s32.totalorder %v63, %v75
    %vm92 = vcmp.eq.s32.totalorder %v63, %v78
    %vm93 = vcmp.eq.s32.totalorder %v63, %v81
    %vm94 = vcmp.eq.s32.totalorder %v63, %v84
    %vm95 = vcmp.eq.s32.totalorder %v63, %v87
    %v96 = vsel %vm88, 1, 0
    %v97 = vsel %vm89, 1, 0
    %v98 = vsel %vm90, 1, 0
    %v99 = vsel %vm91, 1, 0
    %v100 = vsel %vm92, 1, 0
    %v101 = vsel %vm93, 1, 0
    %v102 = vsel %vm94, 1, 0
    %v103 = vsel %vm95, 1, 0
    %v104 = vcvt.s32.f32 %v96
    %v105 = vcvt.s32.f32 %v97
    %v106 = vcvt.s32.f32 %v98
    %v107 = vcvt.s32.f32 %v99
    %v108 = vcvt.s32.f32 %v100
    %v109 = vcvt.s32.f32 %v101
    %v110 = vcvt.s32.f32 %v102
    %v111 = vcvt.s32.f32 %v103
    %112 = vset.pattern.permute.xlu0 0
    %113 = vperm.xlu0 %112, %v54
    %v114 = vpop.permute.xlu0 %113
    %115 = vset.pattern.permute.xlu0 0
    %116 = vperm.xlu0 %115, %v55
    %v117 = vpop.permute.xlu0 %116
    %118 = vset.pattern.permute.xlu0 0
    %119 = vperm.xlu0 %118, %v56
    %v120 = vpop.permute.xlu0 %119
    %121 = vset.pattern.permute.xlu0 0
    %122 = vperm.xlu0 %121, %v57
    %v123 = vpop.permute.xlu0 %122
    %124 = vset.pattern.permute.xlu0 0
    %125 = vperm.xlu0 %124, %v58
    %v126 = vpop.permute.xlu0 %125
    %127 = vset.pattern.permute.xlu0 0
    %128 = vperm.xlu0 %127, %v59
    %v129 = vpop.permute.xlu0 %128
    %130 = vset.pattern.permute.xlu0 0
    %131 = vperm.xlu0 %130, %v60
    %v132 = vpop.permute.xlu0 %131
    %133 = vset.pattern.permute.xlu0 0
    %134 = vperm.xlu0 %133, %v61
    %v135 = vpop.permute.xlu0 %134
    %vm136 = vcmp.eq.s32.totalorder %v63, %v114
    %vm137 = vcmp.eq.s32.totalorder %v63, %v117
    %vm138 = vcmp.eq.s32.totalorder %v63, %v120
    %vm139 = vcmp.eq.s32.totalorder %v63, %v123
    %vm140 = vcmp.eq.s32.totalorder %v63, %v126
    %vm141 = vcmp.eq.s32.totalorder %v63, %v129
    %vm142 = vcmp.eq.s32.totalorder %v63, %v132
    %vm143 = vcmp.eq.s32.totalorder %v63, %v135
    %v144 = vsel %vm136, 1, 0
    %v145 = vsel %vm137, 1, 0
    %v146 = vsel %vm138, 1, 0
    %v147 = vsel %vm139, 1, 0
    %v148 = vsel %vm140, 1, 0
    %v149 = vsel %vm141, 1, 0
    %v150 = vsel %vm142, 1, 0
    %v151 = vsel %vm143, 1, 0
    %v152 = vcvt.s32.f32 %v144
    %v153 = vcvt.s32.f32 %v145
    %v154 = vcvt.s32.f32 %v146
    %v155 = vcvt.s32.f32 %v147
    %v156 = vcvt.s32.f32 %v148
    %v157 = vcvt.s32.f32 %v149
    %v158 = vcvt.s32.f32 %v150
    %v159 = vcvt.s32.f32 %v151
    %v160 = vld [vmem:[%s2] sm:$0xff]
    %v161 = vld [vmem:[%s2 + $0x8] sm:$0xff]
    %v162 = vld [vmem:[%s2 + $0x10] sm:$0xff]
    %v163 = vld [vmem:[%s2 + $0x18] sm:$0xff]
    %v164 = vld [vmem:[%s2 + $0x20] sm:$0xff]
    %v165 = vld [vmem:[%s2 + $0x28] sm:$0xff]
    %v166 = vld [vmem:[%s2 + $0x30] sm:$0xff]
    %v167 = vld [vmem:[%s2 + $0x38] sm:$0xff]
    %v168 = vld [vmem:[%s2 + $0x40] sm:$0xff]
    %v169 = vld [vmem:[%s2 + $0x48] sm:$0xff]
    %v170 = vld [vmem:[%s2 + $0x50] sm:$0xff]
    %v171 = vld [vmem:[%s2 + $0x58] sm:$0xff]
    %v172 = vld [vmem:[%s2 + $0x60] sm:$0xf]
    %v173 = vld [vmem:[%s3] sm:$0x3]
    %vm174 = vcmask 15360
    %v176 = vsel %vm174, %v152, 0
    %v179 = vsel %vm174, %v153, 0
    %v182 = vsel %vm174, %v154, 0
    %v185 = vsel %vm174, %v155, 0
    %v188 = vsel %vm174, %v156, 0
    %v191 = vsel %vm174, %v157, 0
    %v194 = vsel %vm174, %v158, 0
    %v197 = vsel %vm174, %v159, 0
    %vm199 = vcmask 1041408
    %v201 = vsel %vm199, %v173, 0
    %203 = vmatpush.msra.mxu0 0.0
    %204 = vmatpush.msra.mxu0 0.0
    %205 = vmatpush.msra.mxu0 0.0
    %206 = vmatpush.msra.mxu0 0.0
    %207 = vmatpush.msra.mxu0 0.0
    %208 = vmatpush.msra.mxu0 0.0
    %209 = vmatpush.msra.mxu0 0.0
    %210 = vmatpush.msra.mxu0 0.0
    %211 = vmatpush.msra.mxu0 0.0
    %212 = vmatpush.msra.mxu0 0.0
    %213 = vmatpush.msra.mxu0 0.0
    %214 = vmatpush.msra.mxu0 0.0
    %215 = vmatpush.msra.mxu0 0.0
    %216 = vmatpush.msra.mxu0 0.0
    %217 = vmatpush.msra.mxu0 0.0
    %218 = vmatpush.msra.mxu0 %v201
    %219 = vmatmul.f32.gmra.mxu0 %v176
    %v220 = vpop.f32.mrf.mxu0
    %v221 = vadd.f32 0.0, %v220
    %222 = vmatmul.f32.gmra.mxu0 %v179
    %v223 = vpop.f32.mrf.mxu0
    %v224 = vadd.f32 0.0, %v223
    %225 = vmatmul.f32.gmra.mxu0 %v182
    %v226 = vpop.f32.mrf.mxu0
    %v227 = vadd.f32 0.0, %v226
    %228 = vmatmul.f32.gmra.mxu0 %v185
    %v229 = vpop.f32.mrf.mxu0
    %v230 = vadd.f32 0.0, %v229
    %231 = vmatmul.f32.gmra.mxu0 %v188
    %v232 = vpop.f32.mrf.mxu0
    %v233 = vadd.f32 0.0, %v232
    %234 = vmatmul.f32.gmra.mxu0 %v191
    %v235 = vpop.f32.mrf.mxu0
    %v236 = vadd.f32 0.0, %v235
    %237 = vmatmul.f32.gmra.mxu0 %v194
    %v238 = vpop.f32.mrf.mxu0
    %v239 = vadd.f32 0.0, %v238
    %240 = vmatmul.f32.gmra.mxu0 %v197
    %v241 = vpop.f32.mrf.mxu0
    %v242 = vadd.f32 0.0, %v241
    %243 = vdwg.mxu0
    %vm244 = vcmask 818176
    %v246 = vsel %vm244, %v104, 0
    %v249 = vsel %vm244, %v105, 0
    %v252 = vsel %vm244, %v106, 0
    %v255 = vsel %vm244, %v107, 0
    %v258 = vsel %vm244, %v108, 0
    %v261 = vsel %vm244, %v109, 0
    %v264 = vsel %vm244, %v110, 0
    %v267 = vsel %vm244, %v111, 0
    %vm269 = vcmask 1043456
    %v271 = vsel %vm269, %v172, 0
    %273 = vmatpush.msra.mxu0 0.0
    %274 = vmatpush.msra.mxu0 0.0
    %275 = vmatpush.msra.mxu0 0.0
    %276 = vmatpush.msra.mxu0 %v271
    %277 = vmatpush.msra.mxu0 %v171
    %278 = vmatpush.msra.mxu0 %v170
    %279 = vmatpush.msra.mxu0 %v169
    %280 = vmatpush.msra.mxu0 %v168
    %281 = vmatpush.msra.mxu0 %v167
    %282 = vmatpush.msra.mxu0 %v166
    %283 = vmatpush.msra.mxu0 %v165
    %284 = vmatpush.msra.mxu0 %v164
    %285 = vmatpush.msra.mxu0 %v163
    %286 = vmatpush.msra.mxu0 %v162
    %287 = vmatpush.msra.mxu0 %v161
    %288 = vmatpush.msra.mxu0 %v160
    %289 = vmatmul.f32.gmra.mxu0 %v246
    %v290 = vpop.f32.mrf.mxu0
    %v291 = vadd.f32 %v221, %v290
    %292 = vmatmul.f32.gmra.mxu0 %v249
    %v293 = vpop.f32.mrf.mxu0
    %v294 = vadd.f32 %v224, %v293
    %295 = vmatmul.f32.gmra.mxu0 %v252
    %v296 = vpop.f32.mrf.mxu0
    %v297 = vadd.f32 %v227, %v296
    %298 = vmatmul.f32.gmra.mxu0 %v255
    %v299 = vpop.f32.mrf.mxu0
    %v300 = vadd.f32 %v230, %v299
    %301 = vmatmul.f32.gmra.mxu0 %v258
    %v302 = vpop.f32.mrf.mxu0
    %v303 = vadd.f32 %v233, %v302
    %304 = vmatmul.f32.gmra.mxu0 %v261
    %v305 = vpop.f32.mrf.mxu0
    %v306 = vadd.f32 %v236, %v305
    %307 = vmatmul.f32.gmra.mxu0 %v264
    %v308 = vpop.f32.mrf.mxu0
    %v309 = vadd.f32 %v239, %v308
    %310 = vmatmul.f32.gmra.mxu0 %v267
    %v311 = vpop.f32.mrf.mxu0
    %v312 = vadd.f32 %v242, %v311
    %313 = vdwg.mxu0
    %v314 = vld [vmem:[%s4] sm:$0xff]
    %v315 = vld [vmem:[%s4 + $0x8] sm:$0xff]
    %v316 = vld [vmem:[%s4 + $0x10] sm:$0xff]
    %v317 = vld [vmem:[%s4 + $0x18] sm:$0xff]
    %v318 = vld [vmem:[%s4 + $0x20] sm:$0xff]
    %v319 = vld [vmem:[%s4 + $0x28] sm:$0xff]
    %v320 = vld [vmem:[%s4 + $0x30] sm:$0xff]
    %v321 = vld [vmem:[%s4 + $0x38] sm:$0xff]
    %v322 = vadd.f32 %v291, %v314
    %v323 = vadd.f32 %v294, %v315
    %v324 = vadd.f32 %v297, %v316
    %v325 = vadd.f32 %v300, %v317
    %v326 = vadd.f32 %v303, %v318
    %v327 = vadd.f32 %v306, %v319
    %v328 = vadd.f32 %v309, %v320
    %v329 = vadd.f32 %v312, %v321
    %vm330 = vcmask 261120
    %v331 = vsel %vm330, %v322, 0.0
    %332 = vadd.xlane.f32.xlu0 %v331
    %v333 = vpop.xlane.xlu0 %332
    %v334 = vsel %vm330, %v323, 0.0
    %335 = vadd.xlane.f32.xlu0 %v334
    %v336 = vpop.xlane.xlu0 %335
    %v337 = vsel %vm330, %v324, 0.0
    %338 = vadd.xlane.f32.xlu0 %v337
    %v339 = vpop.xlane.xlu0 %338
    %v340 = vsel %vm330, %v325, 0.0
    %341 = vadd.xlane.f32.xlu0 %v340
    %v342 = vpop.xlane.xlu0 %341
    %v343 = vsel %vm330, %v326, 0.0
    %344 = vadd.xlane.f32.xlu0 %v343
    %v345 = vpop.xlane.xlu0 %344
    %v346 = vsel %vm330, %v327, 0.0
    %347 = vadd.xlane.f32.xlu0 %v346
    %v348 = vpop.xlane.xlu0 %347
    %v349 = vsel %vm330, %v328, 0.0
    %350 = vadd.xlane.f32.xlu0 %v349
    %v351 = vpop.xlane.xlu0 %350
    %v352 = vsel %vm330, %v329, 0.0
    %353 = vadd.xlane.f32.xlu0 %v352
    %v354 = vpop.xlane.xlu0 %353
    %v355 = vrcp.pop 32.0
    %v356 = vmul.f32 32.0, %v355
    %v357 = vsub.f32 1.0, %v356
    %v358 = vmul.f32 %v355, %v357
    %v359 = vadd.f32 %v355, %v358
    %vm360 = vweird.f32 %v355
    %v361 = vsel %vm360, %v355, %v359
    %v362 = vmul.f32 %v333, %v361
    %v363 = vmul.f32 %v336, %v361
    %v364 = vmul.f32 %v339, %v361
    %v365 = vmul.f32 %v342, %v361
    %v366 = vmul.f32 %v345, %v361
    %v367 = vmul.f32 %v348, %v361
    %v368 = vmul.f32 %v351, %v361
    %v369 = vmul.f32 %v354, %v361
    %v370 = vsub.f32 %v322, %v362
    %v371 = vsub.f32 %v323, %v363
    %v372 = vsub.f32 %v324, %v364
    %v373 = vsub.f32 %v325, %v365
    %v374 = vsub.f32 %v326, %v366
    %v375 = vsub.f32 %v327, %v367
    %v376 = vsub.f32 %v328, %v368
    %v377 = vsub.f32 %v329, %v369
    %v378 = vmul.f32 %v370, %v370
    %v379 = vmul.f32 %v371, %v371
    %v380 = vmul.f32 %v372, %v372
    %v381 = vmul.f32 %v373, %v373
    %v382 = vmul.f32 %v374, %v374
    %v383 = vmul.f32 %v375, %v375
    %v384 = vmul.f32 %v376, %v376
    %v385 = vmul.f32 %v377, %v377
    %v386 = vsel %vm330, %v378, 0.0
    %387 = vadd.xlane.f32.xlu0 %v386
    %v388 = vpop.xlane.xlu0 %387
    %v389 = vsel %vm330, %v379, 0.0
    %390 = vadd.xlane.f32.xlu0 %v389
    %v391 = vpop.xlane.xlu0 %390
    %v392 = vsel %vm330, %v380, 0.0
    %393 = vadd.xlane.f32.xlu0 %v392
    %v394 = vpop.xlane.xlu0 %393
    %v395 = vsel %vm330, %v381, 0.0
    %396 = vadd.xlane.f32.xlu0 %v395
    %v397 = vpop.xlane.xlu0 %396
    %v398 = vsel %vm330, %v382, 0.0
    %399 = vadd.xlane.f32.xlu0 %v398
    %v400 = vpop.xlane.xlu0 %399
    %v401 = vsel %vm330, %v383, 0.0
    %402 = vadd.xlane.f32.xlu0 %v401
    %v403 = vpop.xlane.xlu0 %402
    %v404 = vsel %vm330, %v384, 0.0
    %405 = vadd.xlane.f32.xlu0 %v404
    %v406 = vpop.xlane.xlu0 %405
    %v407 = vsel %vm330, %v385, 0.0
    %408 = vadd.xlane.f32.xlu0 %v407
    %v409 = vpop.xlane.xlu0 %408
    %v410 = vmul.f32 %v388, %v361
    %v411 = vmul.f32 %v391, %v361
    %v412 = vmul.f32 %v394, %v361
    %v413 = vmul.f32 %v397, %v361
    %v414 = vmul.f32 %v400, %v361
    %v415 = vmul.f32 %v403, %v361
    %v416 = vmul.f32 %v406, %v361
    %v417 = vmul.f32 %v409, %v361
    %v418 = vadd.f32 %v410, 1e-12
    %v419 = vadd.f32 %v411, 1e-12
    %v420 = vadd.f32 %v412, 1e-12
    %v421 = vadd.f32 %v413, 1e-12
    %v422 = vadd.f32 %v414, 1e-12
    %v423 = vadd.f32 %v415, 1e-12
    %v424 = vadd.f32 %v416, 1e-12
    %v425 = vadd.f32 %v417, 1e-12
    %v426 = vrsqrt.pop %v418
    %v427 = vmul.f32 %v426, %v418
    %v428 = vmul.f32 %v427, %v426
    %v429 = vmul.f32 0.5, %v428
    %v430 = vsub.f32 1.5, %v429
    %v431 = vmul.f32 %v426, %v430
    %vm432 = vweird.f32 %v418
    %vm433 = vweird.f32 %v426
    %vm434 = vmor %vm432, %vm433
    %v435 = vsel %vm434, %v426, %v431
    %v436 = vrsqrt.pop %v419
    %v437 = vmul.f32 %v436, %v419
    %v438 = vmul.f32 %v437, %v436
    %v439 = vmul.f32 0.5, %v438
    %v440 = vsub.f32 1.5, %v439
    %v441 = vmul.f32 %v436, %v440
    %vm442 = vweird.f32 %v419
    %vm443 = vweird.f32 %v436
    %vm444 = vmor %vm442, %vm443
    %v445 = vsel %vm444, %v436, %v441
    %v446 = vrsqrt.pop %v420
    %v447 = vmul.f32 %v446, %v420
    %v448 = vmul.f32 %v447, %v446
    %v449 = vmul.f32 0.5, %v448
    %v450 = vsub.f32 1.5, %v449
    %v451 = vmul.f32 %v446, %v450
    %vm452 = vweird.f32 %v420
    %vm453 = vweird.f32 %v446
    %vm454 = vmor %vm452, %vm453
    %v455 = vsel %vm454, %v446, %v451
    %v456 = vrsqrt.pop %v421
    %v457 = vmul.f32 %v456, %v421
    %v458 = vmul.f32 %v457, %v456
    %v459 = vmul.f32 0.5, %v458
    %v460 = vsub.f32 1.5, %v459
    %v461 = vmul.f32 %v456, %v460
    %vm462 = vweird.f32 %v421
    %vm463 = vweird.f32 %v456
    %vm464 = vmor %vm462, %vm463
    %v465 = vsel %vm464, %v456, %v461
    %v466 = vrsqrt.pop %v422
    %v467 = vmul.f32 %v466, %v422
    %v468 = vmul.f32 %v467, %v466
    %v469 = vmul.f32 0.5, %v468
    %v470 = vsub.f32 1.5, %v469
    %v471 = vmul.f32 %v466, %v470
    %vm472 = vweird.f32 %v422
    %vm473 = vweird.f32 %v466
    %vm474 = vmor %vm472, %vm473
    %v475 = vsel %vm474, %v466, %v471
    %v476 = vrsqrt.pop %v423
    %v477 = vmul.f32 %v476, %v423
    %v478 = vmul.f32 %v477, %v476
    %v479 = vmul.f32 0.5, %v478
    %v480 = vsub.f32 1.5, %v479
    %v481 = vmul.f32 %v476, %v480
    %vm482 = vweird.f32 %v423
    %vm483 = vweird.f32 %v476
    %vm484 = vmor %vm482, %vm483
    %v485 = vsel %vm484, %v476, %v481
    %v486 = vrsqrt.pop %v424
    %v487 = vmul.f32 %v486, %v424
    %v488 = vmul.f32 %v487, %v486
    %v489 = vmul.f32 0.5, %v488
    %v490 = vsub.f32 1.5, %v489
    %v491 = vmul.f32 %v486, %v490
    %vm492 = vweird.f32 %v424
    %vm493 = vweird.f32 %v486
    %vm494 = vmor %vm492, %vm493
    %v495 = vsel %vm494, %v486, %v491
    %v496 = vrsqrt.pop %v425
    %v497 = vmul.f32 %v496, %v425
    %v498 = vmul.f32 %v497, %v496
    %v499 = vmul.f32 0.5, %v498
    %v500 = vsub.f32 1.5, %v499
    %v501 = vmul.f32 %v496, %v500
    %vm502 = vweird.f32 %v425
    %vm503 = vweird.f32 %v496
    %vm504 = vmor %vm502, %vm503
    %v505 = vsel %vm504, %v496, %v501
    %v506 = vmul.f32 %v370, %v435
    %v507 = vmul.f32 %v371, %v445
    %v508 = vmul.f32 %v372, %v455
    %v509 = vmul.f32 %v373, %v465
    %v510 = vmul.f32 %v374, %v475
    %v511 = vmul.f32 %v375, %v485
    %v512 = vmul.f32 %v376, %v495
    %v513 = vmul.f32 %v377, %v505
    %v514 = vld [vmem:[%s12] sm:$0x1]
    %v515 = vperm.slane %v514, 0
    %v516 = vmul.f32 %v506, %v515
    %v517 = vmul.f32 %v507, %v515
    %v518 = vmul.f32 %v508, %v515
    %v519 = vmul.f32 %v509, %v515
    %v520 = vmul.f32 %v510, %v515
    %v521 = vmul.f32 %v511, %v515
    %v522 = vmul.f32 %v512, %v515
    %v523 = vmul.f32 %v513, %v515
    %v524 = vld [vmem:[%s12 + $0x1] sm:$0x1]
    %v525 = vperm.slane %v524, 0
    %v526 = vadd.f32 %v516, %v525
    %v527 = vadd.f32 %v517, %v525
    %v528 = vadd.f32 %v518, %v525
    %v529 = vadd.f32 %v519, %v525
    %v530 = vadd.f32 %v520, %v525
    %v531 = vadd.f32 %v521, %v525
    %v532 = vadd.f32 %v522, %v525
    %v533 = vadd.f32 %v523, %v525
    %v534 = vpack.c.bf16 %v527, %v526
    %v535 = vpack.c.bf16 %v529, %v528
    %v536 = vpack.c.bf16 %v531, %v530
    %v537 = vpack.c.bf16 %v533, %v532
    %v538 = vld [vmem:[%s5] sm:$0xf]
    %v539 = vld [vmem:[%s5 + $0x4] sm:$0xf]
    %v540 = vld [vmem:[%s5 + $0x8] sm:$0xf]
    %v541 = vld [vmem:[%s5 + $0xc] sm:$0xf]
    %v542 = vld [vmem:[%s12 + $0x2] sm:$0x1]
    %v543 = vperm.slane %v542, 0
    %v548 = vunpack.c.l.b16 %v538
    %v549 = vunpack.c.l.b16 %v539
    %v550 = vunpack.c.l.b16 %v540
    %v551 = vunpack.c.l.b16 %v541
    %v552 = vpack.c.b16 %v549, %v548
    %v553 = vpack.c.b16 %v551, %v550
    %v557 = vsel %vm330, %v534, 0
    %v560 = vsel %vm330, %v535, 0
    %v563 = vsel %vm330, %v536, 0
    %v566 = vsel %vm330, %v537, 0
    %568 = vmatpush.bf16.msra.mxu0 0
    %569 = vmatpush.bf16.msra.mxu0 0
    %570 = vmatpush.bf16.msra.mxu0 0
    %571 = vmatpush.bf16.msra.mxu0 0
    %572 = vmatpush.bf16.msra.mxu0 0
    %573 = vmatpush.bf16.msra.mxu0 0
    %574 = vmatpush.bf16.msra.mxu0 %v553
    %575 = vmatpush.bf16.msra.mxu0 %v552
    %576 = vmatmul.bf16.gmra.mxu0 %v557
    %v577 = vpop.f32.mrf.mxu0
    %v578 = vadd.f32 %v543, %v577
    %v579 = vpop.f32.mrf.mxu0
    %v580 = vadd.f32 %v543, %v579
    %581 = vmatmul.bf16.gmra.mxu0 %v560
    %v582 = vpop.f32.mrf.mxu0
    %v583 = vadd.f32 %v543, %v582
    %v584 = vpop.f32.mrf.mxu0
    %v585 = vadd.f32 %v543, %v584
    %586 = vmatmul.bf16.gmra.mxu0 %v563
    %v587 = vpop.f32.mrf.mxu0
    %v588 = vadd.f32 %v543, %v587
    %v589 = vpop.f32.mrf.mxu0
    %v590 = vadd.f32 %v543, %v589
    %591 = vmatmul.bf16.gmra.mxu0 %v566
    %v592 = vpop.f32.mrf.mxu0
    %v593 = vadd.f32 %v543, %v592
    %v594 = vpop.f32.mrf.mxu0
    %v595 = vadd.f32 %v543, %v594
    %596 = vdwg.mxu0
    %v597 = vpack.c.bf16 %v580, %v578
    %v598 = vpack.c.bf16 %v585, %v583
    %v599 = vpack.c.bf16 %v590, %v588
    %v600 = vpack.c.bf16 %v595, %v593
    %605 = vrot.lane.b32.xlu0 %v597, 96
    %v606 = vpop.permute.xlu0 %605
    %607 = vrot.lane.b32.xlu0 %v598, 96
    %v608 = vpop.permute.xlu0 %607
    %609 = vrot.lane.b32.xlu0 %v599, 96
    %v610 = vpop.permute.xlu0 %609
    %611 = vrot.lane.b32.xlu0 %v600, 96
    %v612 = vpop.permute.xlu0 %611
    %v614 = vsel %vm330, %v597, 0
    %v617 = vsel %vm330, %v598, 0
    %v620 = vsel %vm330, %v599, 0
    %v623 = vsel %vm330, %v600, 0
    %v626 = vsel %vm330, %v606, 0
    %v629 = vsel %vm330, %v608, 0
    %v632 = vsel %vm330, %v610, 0
    %v635 = vsel %vm330, %v612, 0
    %637 = vmatpush.bf16.xpose.msra.mxu0 0
    %638 = vmatpush.bf16.xpose.msra.mxu0 0
    %639 = vmatpush.bf16.xpose.msra.mxu0 0
    %640 = vmatpush.bf16.xpose.msra.mxu0 0
    %641 = vmatpush.bf16.xpose.msra.mxu0 %v635
    %642 = vmatpush.bf16.xpose.msra.mxu0 %v632
    %643 = vmatpush.bf16.xpose.msra.mxu0 %v629
    %644 = vmatpush.bf16.xpose.msra.mxu0 %v626
    %645 = vmatmul.bf16.gmra.mxu0 %v614
    %v646 = vpop.f32.mrf.mxu0
    %v647 = vadd.f32 0.0, %v646
    %v648 = vpop.f32.mrf.mxu0
    %v649 = vadd.f32 0.0, %v648
    %650 = vmatmul.bf16.gmra.mxu0 %v617
    %v651 = vpop.f32.mrf.mxu0
    %v652 = vadd.f32 0.0, %v651
    %v653 = vpop.f32.mrf.mxu0
    %v654 = vadd.f32 0.0, %v653
    %655 = vmatmul.bf16.gmra.mxu0 %v620
    %v656 = vpop.f32.mrf.mxu0
    %v657 = vadd.f32 0.0, %v656
    %v658 = vpop.f32.mrf.mxu0
    %v659 = vadd.f32 0.0, %v658
    %660 = vmatmul.bf16.gmra.mxu0 %v623
    %v661 = vpop.f32.mrf.mxu0
    %v662 = vadd.f32 0.0, %v661
    %v663 = vpop.f32.mrf.mxu0
    %v664 = vadd.f32 0.0, %v663
    %665 = vdwg.mxu0
    %v666 = vmul.f32 %v647, 0.17677669
    %v667 = vmul.f32 %v649, 0.17677669
    %v668 = vmul.f32 %v652, 0.17677669
    %v669 = vmul.f32 %v654, 0.17677669
    %v670 = vmul.f32 %v657, 0.17677669
    %v671 = vmul.f32 %v659, 0.17677669
    %v672 = vmul.f32 %v662, 0.17677669
    %v673 = vmul.f32 %v664, 0.17677669
    %v674 = vlaneseq
    %v675 = vshrl.u32 %v674, 7
    %v676 = vadd.s32 %v675, 8
    %v677 = vadd.s32 %v675, 16
    %v678 = vadd.s32 %v675, 24
    %v679 = vadd.s32 %v675, 32
    %v680 = vadd.s32 %v675, 40
    %v681 = vadd.s32 %v675, 48
    %v682 = vadd.s32 %v675, 56
    %v683 = vshra.s32 %v675, 3
    %v684 = vshra.s32 %v676, 3
    %v685 = vshra.s32 %v677, 3
    %v686 = vshra.s32 %v678, 3
    %v687 = vshra.s32 %v679, 3
    %v688 = vshra.s32 %v680, 3
    %v689 = vshra.s32 %v681, 3
    %v690 = vshra.s32 %v682, 3
    %v691 = vshra.s32 %v63, 3
    %vm692 = vcmp.eq.s32.totalorder %v683, %v691
    %vm693 = vcmp.eq.s32.totalorder %v684, %v691
    %vm694 = vcmp.eq.s32.totalorder %v685, %v691
    %vm695 = vcmp.eq.s32.totalorder %v686, %v691
    %vm696 = vcmp.eq.s32.totalorder %v687, %v691
    %vm697 = vcmp.eq.s32.totalorder %v688, %v691
    %vm698 = vcmp.eq.s32.totalorder %v689, %v691
    %vm699 = vcmp.eq.s32.totalorder %v690, %v691
    %v700 = vsel %vm692, %v666, -1e+30
    %v701 = vsel %vm693, %v667, -1e+30
    %v702 = vsel %vm694, %v668, -1e+30
    %v703 = vsel %vm695, %v669, -1e+30
    %v704 = vsel %vm696, %v670, -1e+30
    %v705 = vsel %vm697, %v671, -1e+30
    %v706 = vsel %vm698, %v672, -1e+30
    %v707 = vsel %vm699, %v673, -1e+30
    %vm708 = vcmask 523264
    %v709 = vsel %vm708, %v700, -inf
    %710 = vmax.xlane.f32.xlu0 %v709
    %v711 = vpop.xlane.xlu0 %710
    %v712 = vsel %vm708, %v701, -inf
    %713 = vmax.xlane.f32.xlu0 %v712
    %v714 = vpop.xlane.xlu0 %713
    %v715 = vsel %vm708, %v702, -inf
    %716 = vmax.xlane.f32.xlu0 %v715
    %v717 = vpop.xlane.xlu0 %716
    %v718 = vsel %vm708, %v703, -inf
    %719 = vmax.xlane.f32.xlu0 %v718
    %v720 = vpop.xlane.xlu0 %719
    %v721 = vsel %vm708, %v704, -inf
    %722 = vmax.xlane.f32.xlu0 %v721
    %v723 = vpop.xlane.xlu0 %722
    %v724 = vsel %vm708, %v705, -inf
    %725 = vmax.xlane.f32.xlu0 %v724
    %v726 = vpop.xlane.xlu0 %725
    %v727 = vsel %vm708, %v706, -inf
    %728 = vmax.xlane.f32.xlu0 %v727
    %v729 = vpop.xlane.xlu0 %728
    %v730 = vsel %vm708, %v707, -inf
    %731 = vmax.xlane.f32.xlu0 %v730
    %v732 = vpop.xlane.xlu0 %731
    %v733 = vsub.f32 %v700, %v711
    %v734 = vsub.f32 %v701, %v714
    %v735 = vsub.f32 %v702, %v717
    %v736 = vsub.f32 %v703, %v720
    %v737 = vsub.f32 %v704, %v723
    %v738 = vsub.f32 %v705, %v726
    %v739 = vsub.f32 %v706, %v729
    %v740 = vsub.f32 %v707, %v732
    %v741 = vmul.f32 %v733, 1.442695
    %v742 = vpow.pop %v741
    %v743 = vmul.f32 %v734, 1.442695
    %v744 = vpow.pop %v743
    %v745 = vmul.f32 %v735, 1.442695
    %v746 = vpow.pop %v745
    %v747 = vmul.f32 %v736, 1.442695
    %v748 = vpow.pop %v747
    %v749 = vmul.f32 %v737, 1.442695
    %v750 = vpow.pop %v749
    %v751 = vmul.f32 %v738, 1.442695
    %v752 = vpow.pop %v751
    %v753 = vmul.f32 %v739, 1.442695
    %v754 = vpow.pop %v753
    %v755 = vmul.f32 %v740, 1.442695
    %v756 = vpow.pop %v755
    %v757 = vsel %vm708, %v742, 0.0
    %758 = vadd.xlane.f32.xlu0 %v757
    %v759 = vpop.xlane.xlu0 %758
    %v760 = vsel %vm708, %v744, 0.0
    %761 = vadd.xlane.f32.xlu0 %v760
    %v762 = vpop.xlane.xlu0 %761
    %v763 = vsel %vm708, %v746, 0.0
    %764 = vadd.xlane.f32.xlu0 %v763
    %v765 = vpop.xlane.xlu0 %764
    %v766 = vsel %vm708, %v748, 0.0
    %767 = vadd.xlane.f32.xlu0 %v766
    %v768 = vpop.xlane.xlu0 %767
    %v769 = vsel %vm708, %v750, 0.0
    %770 = vadd.xlane.f32.xlu0 %v769
    %v771 = vpop.xlane.xlu0 %770
    %v772 = vsel %vm708, %v752, 0.0
    %773 = vadd.xlane.f32.xlu0 %v772
    %v774 = vpop.xlane.xlu0 %773
    %v775 = vsel %vm708, %v754, 0.0
    %776 = vadd.xlane.f32.xlu0 %v775
    %v777 = vpop.xlane.xlu0 %776
    %v778 = vsel %vm708, %v756, 0.0
    %779 = vadd.xlane.f32.xlu0 %v778
    %v780 = vpop.xlane.xlu0 %779
    %v781 = vrcp.pop %v759
    %v782 = vrcp.pop %v762
    %v783 = vrcp.pop %v765
    %v784 = vrcp.pop %v768
    %v785 = vrcp.pop %v771
    %v786 = vrcp.pop %v774
    %v787 = vrcp.pop %v777
    %v788 = vrcp.pop %v780
    %v789 = vmul.f32 %v742, %v781
    %v790 = vmul.f32 %v744, %v782
    %v791 = vmul.f32 %v746, %v783
    %v792 = vmul.f32 %v748, %v784
    %v793 = vmul.f32 %v750, %v785
    %v794 = vmul.f32 %v752, %v786
    %v795 = vmul.f32 %v754, %v787
    %v796 = vmul.f32 %v756, %v788
    %v797 = vpack.c.bf16 %v790, %v789
    %v798 = vpack.c.bf16 %v792, %v791
    %v799 = vpack.c.bf16 %v794, %v793
    %v800 = vpack.c.bf16 %v796, %v795
    %801 = vrot.lane.b32.xlu0 %v597, 64
    %v802 = vpop.permute.xlu0 %801
    %803 = vrot.lane.b32.xlu0 %v598, 64
    %v804 = vpop.permute.xlu0 %803
    %805 = vrot.lane.b32.xlu0 %v599, 64
    %v806 = vpop.permute.xlu0 %805
    %807 = vrot.lane.b32.xlu0 %v600, 64
    %v808 = vpop.permute.xlu0 %807
    %v814 = vsel %vm708, %v797, 0
    %v817 = vsel %vm708, %v798, 0
    %v820 = vsel %vm708, %v799, 0
    %v823 = vsel %vm708, %v800, 0
    %825 = vmatpush.bf16.msra.mxu0 0
    %826 = vmatpush.bf16.msra.mxu0 0
    %827 = vmatpush.bf16.msra.mxu0 0
    %828 = vmatpush.bf16.msra.mxu0 0
    %829 = vmatpush.bf16.msra.mxu0 %v808
    %830 = vmatpush.bf16.msra.mxu0 %v806
    %831 = vmatpush.bf16.msra.mxu0 %v804
    %832 = vmatpush.bf16.msra.mxu0 %v802
    %833 = vmatmul.bf16.gmra.mxu0 %v814
    %v834 = vpop.f32.mrf.mxu0
    %v835 = vadd.f32 0.0, %v834
    %v836 = vpop.f32.mrf.mxu0
    %v837 = vadd.f32 0.0, %v836
    %838 = vmatmul.bf16.gmra.mxu0 %v817
    %v839 = vpop.f32.mrf.mxu0
    %v840 = vadd.f32 0.0, %v839
    %v841 = vpop.f32.mrf.mxu0
    %v842 = vadd.f32 0.0, %v841
    %843 = vmatmul.bf16.gmra.mxu0 %v820
    %v844 = vpop.f32.mrf.mxu0
    %v845 = vadd.f32 0.0, %v844
    %v846 = vpop.f32.mrf.mxu0
    %v847 = vadd.f32 0.0, %v846
    %848 = vmatmul.bf16.gmra.mxu0 %v823
    %v849 = vpop.f32.mrf.mxu0
    %v850 = vadd.f32 0.0, %v849
    %v851 = vpop.f32.mrf.mxu0
    %v852 = vadd.f32 0.0, %v851
    %853 = vdwg.mxu0
    %v854 = vpack.c.bf16 %v837, %v835
    %v855 = vpack.c.bf16 %v842, %v840
    %v856 = vpack.c.bf16 %v847, %v845
    %v857 = vpack.c.bf16 %v852, %v850
    %v858 = vld [vmem:[%s6] sm:$0xf]
    %v859 = vld [vmem:[%s6 + $0x4] sm:$0xf]
    %v860 = vld [vmem:[%s6 + $0x8] sm:$0xf]
    %v861 = vld [vmem:[%s6 + $0xc] sm:$0xf]
    %v862 = vld [vmem:[%s12 + $0x3] sm:$0x1]
    %v863 = vperm.slane %v862, 0
    %v868 = vunpack.c.l.b16 %v858
    %v869 = vunpack.c.l.b16 %v859
    %v870 = vunpack.c.l.b16 %v860
    %v871 = vunpack.c.l.b16 %v861
    %v872 = vpack.c.b16 %v869, %v868
    %v873 = vpack.c.b16 %v871, %v870
    %v877 = vsel %vm330, %v854, 0
    %v880 = vsel %vm330, %v855, 0
    %v883 = vsel %vm330, %v856, 0
    %v886 = vsel %vm330, %v857, 0
    %888 = vmatpush.bf16.msra.mxu0 0
    %889 = vmatpush.bf16.msra.mxu0 0
    %890 = vmatpush.bf16.msra.mxu0 0
    %891 = vmatpush.bf16.msra.mxu0 0
    %892 = vmatpush.bf16.msra.mxu0 0
    %893 = vmatpush.bf16.msra.mxu0 0
    %894 = vmatpush.bf16.msra.mxu0 %v873
    %895 = vmatpush.bf16.msra.mxu0 %v872
    %896 = vmatmul.bf16.gmra.mxu0 %v877
    %v897 = vpop.f32.mrf.mxu0
    %v898 = vadd.f32 %v863, %v897
    %v899 = vpop.f32.mrf.mxu0
    %v900 = vadd.f32 %v863, %v899
    %901 = vmatmul.bf16.gmra.mxu0 %v880
    %v902 = vpop.f32.mrf.mxu0
    %v903 = vadd.f32 %v863, %v902
    %v904 = vpop.f32.mrf.mxu0
    %v905 = vadd.f32 %v863, %v904
    %906 = vmatmul.bf16.gmra.mxu0 %v883
    %v907 = vpop.f32.mrf.mxu0
    %v908 = vadd.f32 %v863, %v907
    %v909 = vpop.f32.mrf.mxu0
    %v910 = vadd.f32 %v863, %v909
    %911 = vmatmul.bf16.gmra.mxu0 %v886
    %v912 = vpop.f32.mrf.mxu0
    %v913 = vadd.f32 %v863, %v912
    %v914 = vpop.f32.mrf.mxu0
    %v915 = vadd.f32 %v863, %v914
    %916 = vdwg.mxu0
    %v917 = vadd.f32 %v526, %v898
    %v918 = vadd.f32 %v527, %v900
    %v919 = vadd.f32 %v528, %v903
    %v920 = vadd.f32 %v529, %v905
    %v921 = vadd.f32 %v530, %v908
    %v922 = vadd.f32 %v531, %v910
    %v923 = vadd.f32 %v532, %v913
    %v924 = vadd.f32 %v533, %v915
    %v925 = vsel %vm330, %v917, 0.0
    %926 = vadd.xlane.f32.xlu0 %v925
    %v927 = vpop.xlane.xlu0 %926
    %v928 = vsel %vm330, %v918, 0.0
    %929 = vadd.xlane.f32.xlu0 %v928
    %v930 = vpop.xlane.xlu0 %929
    %v931 = vsel %vm330, %v919, 0.0
    %932 = vadd.xlane.f32.xlu0 %v931
    %v933 = vpop.xlane.xlu0 %932
    %v934 = vsel %vm330, %v920, 0.0
    %935 = vadd.xlane.f32.xlu0 %v934
    %v936 = vpop.xlane.xlu0 %935
    %v937 = vsel %vm330, %v921, 0.0
    %938 = vadd.xlane.f32.xlu0 %v937
    %v939 = vpop.xlane.xlu0 %938
    %v940 = vsel %vm330, %v922, 0.0
    %941 = vadd.xlane.f32.xlu0 %v940
    %v942 = vpop.xlane.xlu0 %941
    %v943 = vsel %vm330, %v923, 0.0
    %944 = vadd.xlane.f32.xlu0 %v943
    %v945 = vpop.xlane.xlu0 %944
    %v946 = vsel %vm330, %v924, 0.0
    %947 = vadd.xlane.f32.xlu0 %v946
    %v948 = vpop.xlane.xlu0 %947
    %v949 = vmul.f32 %v927, %v361
    %v950 = vmul.f32 %v930, %v361
    %v951 = vmul.f32 %v933, %v361
    %v952 = vmul.f32 %v936, %v361
    %v953 = vmul.f32 %v939, %v361
    %v954 = vmul.f32 %v942, %v361
    %v955 = vmul.f32 %v945, %v361
    %v956 = vmul.f32 %v948, %v361
    %v957 = vsub.f32 %v917, %v949
    %v958 = vsub.f32 %v918, %v950
    %v959 = vsub.f32 %v919, %v951
    %v960 = vsub.f32 %v920, %v952
    %v961 = vsub.f32 %v921, %v953
    %v962 = vsub.f32 %v922, %v954
    %v963 = vsub.f32 %v923, %v955
    %v964 = vsub.f32 %v924, %v956
    %v965 = vmul.f32 %v957, %v957
    %v966 = vmul.f32 %v958, %v958
    %v967 = vmul.f32 %v959, %v959
    %v968 = vmul.f32 %v960, %v960
    %v969 = vmul.f32 %v961, %v961
    %v970 = vmul.f32 %v962, %v962
    %v971 = vmul.f32 %v963, %v963
    %v972 = vmul.f32 %v964, %v964
    %v973 = vsel %vm330, %v965, 0.0
    %974 = vadd.xlane.f32.xlu0 %v973
    %v975 = vpop.xlane.xlu0 %974
    %v976 = vsel %vm330, %v966, 0.0
    %977 = vadd.xlane.f32.xlu0 %v976
    %v978 = vpop.xlane.xlu0 %977
    %v979 = vsel %vm330, %v967, 0.0
    %980 = vadd.xlane.f32.xlu0 %v979
    %v981 = vpop.xlane.xlu0 %980
    %v982 = vsel %vm330, %v968, 0.0
    %983 = vadd.xlane.f32.xlu0 %v982
    %v984 = vpop.xlane.xlu0 %983
    %v985 = vsel %vm330, %v969, 0.0
    %986 = vadd.xlane.f32.xlu0 %v985
    %v987 = vpop.xlane.xlu0 %986
    %v988 = vsel %vm330, %v970, 0.0
    %989 = vadd.xlane.f32.xlu0 %v988
    %v990 = vpop.xlane.xlu0 %989
    %v991 = vsel %vm330, %v971, 0.0
    %992 = vadd.xlane.f32.xlu0 %v991
    %v993 = vpop.xlane.xlu0 %992
    %v994 = vsel %vm330, %v972, 0.0
    %995 = vadd.xlane.f32.xlu0 %v994
    %v996 = vpop.xlane.xlu0 %995
    %v997 = vmul.f32 %v975, %v361
    %v998 = vmul.f32 %v978, %v361
    %v999 = vmul.f32 %v981, %v361
    %v1000 = vmul.f32 %v984, %v361
    %v1001 = vmul.f32 %v987, %v361
    %v1002 = vmul.f32 %v990, %v361
    %v1003 = vmul.f32 %v993, %v361
    %v1004 = vmul.f32 %v996, %v361
    %v1005 = vadd.f32 %v997, 1e-12
    %v1006 = vadd.f32 %v998, 1e-12
    %v1007 = vadd.f32 %v999, 1e-12
    %v1008 = vadd.f32 %v1000, 1e-12
    %v1009 = vadd.f32 %v1001, 1e-12
    %v1010 = vadd.f32 %v1002, 1e-12
    %v1011 = vadd.f32 %v1003, 1e-12
    %v1012 = vadd.f32 %v1004, 1e-12
    %v1013 = vrsqrt.pop %v1005
    %v1014 = vmul.f32 %v1013, %v1005
    %v1015 = vmul.f32 %v1014, %v1013
    %v1016 = vmul.f32 0.5, %v1015
    %v1017 = vsub.f32 1.5, %v1016
    %v1018 = vmul.f32 %v1013, %v1017
    %vm1019 = vweird.f32 %v1005
    %vm1020 = vweird.f32 %v1013
    %vm1021 = vmor %vm1019, %vm1020
    %v1022 = vsel %vm1021, %v1013, %v1018
    %v1023 = vrsqrt.pop %v1006
    %v1024 = vmul.f32 %v1023, %v1006
    %v1025 = vmul.f32 %v1024, %v1023
    %v1026 = vmul.f32 0.5, %v1025
    %v1027 = vsub.f32 1.5, %v1026
    %v1028 = vmul.f32 %v1023, %v1027
    %vm1029 = vweird.f32 %v1006
    %vm1030 = vweird.f32 %v1023
    %vm1031 = vmor %vm1029, %vm1030
    %v1032 = vsel %vm1031, %v1023, %v1028
    %v1033 = vrsqrt.pop %v1007
    %v1034 = vmul.f32 %v1033, %v1007
    %v1035 = vmul.f32 %v1034, %v1033
    %v1036 = vmul.f32 0.5, %v1035
    %v1037 = vsub.f32 1.5, %v1036
    %v1038 = vmul.f32 %v1033, %v1037
    %vm1039 = vweird.f32 %v1007
    %vm1040 = vweird.f32 %v1033
    %vm1041 = vmor %vm1039, %vm1040
    %v1042 = vsel %vm1041, %v1033, %v1038
    %v1043 = vrsqrt.pop %v1008
    %v1044 = vmul.f32 %v1043, %v1008
    %v1045 = vmul.f32 %v1044, %v1043
    %v1046 = vmul.f32 0.5, %v1045
    %v1047 = vsub.f32 1.5, %v1046
    %v1048 = vmul.f32 %v1043, %v1047
    %vm1049 = vweird.f32 %v1008
    %vm1050 = vweird.f32 %v1043
    %vm1051 = vmor %vm1049, %vm1050
    %v1052 = vsel %vm1051, %v1043, %v1048
    %v1053 = vrsqrt.pop %v1009
    %v1054 = vmul.f32 %v1053, %v1009
    %v1055 = vmul.f32 %v1054, %v1053
    %v1056 = vmul.f32 0.5, %v1055
    %v1057 = vsub.f32 1.5, %v1056
    %v1058 = vmul.f32 %v1053, %v1057
    %vm1059 = vweird.f32 %v1009
    %vm1060 = vweird.f32 %v1053
    %vm1061 = vmor %vm1059, %vm1060
    %v1062 = vsel %vm1061, %v1053, %v1058
    %v1063 = vrsqrt.pop %v1010
    %v1064 = vmul.f32 %v1063, %v1010
    %v1065 = vmul.f32 %v1064, %v1063
    %v1066 = vmul.f32 0.5, %v1065
    %v1067 = vsub.f32 1.5, %v1066
    %v1068 = vmul.f32 %v1063, %v1067
    %vm1069 = vweird.f32 %v1010
    %vm1070 = vweird.f32 %v1063
    %vm1071 = vmor %vm1069, %vm1070
    %v1072 = vsel %vm1071, %v1063, %v1068
    %v1073 = vrsqrt.pop %v1011
    %v1074 = vmul.f32 %v1073, %v1011
    %v1075 = vmul.f32 %v1074, %v1073
    %v1076 = vmul.f32 0.5, %v1075
    %v1077 = vsub.f32 1.5, %v1076
    %v1078 = vmul.f32 %v1073, %v1077
    %vm1079 = vweird.f32 %v1011
    %vm1080 = vweird.f32 %v1073
    %vm1081 = vmor %vm1079, %vm1080
    %v1082 = vsel %vm1081, %v1073, %v1078
    %v1083 = vrsqrt.pop %v1012
    %v1084 = vmul.f32 %v1083, %v1012
    %v1085 = vmul.f32 %v1084, %v1083
    %v1086 = vmul.f32 0.5, %v1085
    %v1087 = vsub.f32 1.5, %v1086
    %v1088 = vmul.f32 %v1083, %v1087
    %vm1089 = vweird.f32 %v1012
    %vm1090 = vweird.f32 %v1083
    %vm1091 = vmor %vm1089, %vm1090
    %v1092 = vsel %vm1091, %v1083, %v1088
    %v1093 = vmul.f32 %v957, %v1022
    %v1094 = vmul.f32 %v958, %v1032
    %v1095 = vmul.f32 %v959, %v1042
    %v1096 = vmul.f32 %v960, %v1052
    %v1097 = vmul.f32 %v961, %v1062
    %v1098 = vmul.f32 %v962, %v1072
    %v1099 = vmul.f32 %v963, %v1082
    %v1100 = vmul.f32 %v964, %v1092
    %v1101 = vld [vmem:[%s12 + $0x4] sm:$0x1]
    %v1102 = vperm.slane %v1101, 0
    %v1103 = vmul.f32 %v1093, %v1102
    %v1104 = vmul.f32 %v1094, %v1102
    %v1105 = vmul.f32 %v1095, %v1102
    %v1106 = vmul.f32 %v1096, %v1102
    %v1107 = vmul.f32 %v1097, %v1102
    %v1108 = vmul.f32 %v1098, %v1102
    %v1109 = vmul.f32 %v1099, %v1102
    %v1110 = vmul.f32 %v1100, %v1102
    %v1111 = vld [vmem:[%s12 + $0x5] sm:$0x1]
    %v1112 = vperm.slane %v1111, 0
    %v1113 = vadd.f32 %v1103, %v1112
    %v1114 = vadd.f32 %v1104, %v1112
    %v1115 = vadd.f32 %v1105, %v1112
    %v1116 = vadd.f32 %v1106, %v1112
    %v1117 = vadd.f32 %v1107, %v1112
    %v1118 = vadd.f32 %v1108, %v1112
    %v1119 = vadd.f32 %v1109, %v1112
    %v1120 = vadd.f32 %v1110, %v1112
    %v1121 = vpack.c.bf16 %v1114, %v1113
    %v1122 = vpack.c.bf16 %v1116, %v1115
    %v1123 = vpack.c.bf16 %v1118, %v1117
    %v1124 = vpack.c.bf16 %v1120, %v1119
    %v1125 = vld [vmem:[%s7] sm:$0xf]
    %v1126 = vld [vmem:[%s7 + $0x4] sm:$0xf]
    %v1127 = vld [vmem:[%s7 + $0x8] sm:$0xf]
    %v1128 = vld [vmem:[%s7 + $0xc] sm:$0xf]
    %v1129 = vld [vmem:[%s12 + $0x6] sm:$0x1]
    %v1130 = vperm.slane %v1129, 0
    %v1135 = vunpack.c.l.b16 %v1125
    %v1136 = vunpack.c.l.b16 %v1126
    %v1137 = vunpack.c.l.b16 %v1127
    %v1138 = vunpack.c.l.b16 %v1128
    %v1139 = vpack.c.b16 %v1136, %v1135
    %v1140 = vpack.c.b16 %v1138, %v1137
    %v1144 = vsel %vm330, %v1121, 0
    %v1147 = vsel %vm330, %v1122, 0
    %v1150 = vsel %vm330, %v1123, 0
    %v1153 = vsel %vm330, %v1124, 0
    %1155 = vmatpush.bf16.msra.mxu0 0
    %1156 = vmatpush.bf16.msra.mxu0 0
    %1157 = vmatpush.bf16.msra.mxu0 0
    %1158 = vmatpush.bf16.msra.mxu0 0
    %1159 = vmatpush.bf16.msra.mxu0 0
    %1160 = vmatpush.bf16.msra.mxu0 0
    %1161 = vmatpush.bf16.msra.mxu0 %v1140
    %1162 = vmatpush.bf16.msra.mxu0 %v1139
    %1163 = vmatmul.bf16.gmra.mxu0 %v1144
    %v1164 = vpop.f32.mrf.mxu0
    %v1165 = vadd.f32 %v1130, %v1164
    %v1166 = vpop.f32.mrf.mxu0
    %v1167 = vadd.f32 %v1130, %v1166
    %1168 = vmatmul.bf16.gmra.mxu0 %v1147
    %v1169 = vpop.f32.mrf.mxu0
    %v1170 = vadd.f32 %v1130, %v1169
    %v1171 = vpop.f32.mrf.mxu0
    %v1172 = vadd.f32 %v1130, %v1171
    %1173 = vmatmul.bf16.gmra.mxu0 %v1150
    %v1174 = vpop.f32.mrf.mxu0
    %v1175 = vadd.f32 %v1130, %v1174
    %v1176 = vpop.f32.mrf.mxu0
    %v1177 = vadd.f32 %v1130, %v1176
    %1178 = vmatmul.bf16.gmra.mxu0 %v1153
    %v1179 = vpop.f32.mrf.mxu0
    %v1180 = vadd.f32 %v1130, %v1179
    %v1181 = vpop.f32.mrf.mxu0
    %v1182 = vadd.f32 %v1130, %v1181
    %1183 = vdwg.mxu0
    %v1184 = vmul.f32 %v1165, %v1165
    %v1185 = vmul.f32 %v1167, %v1167
    %v1186 = vmul.f32 %v1170, %v1170
    %v1187 = vmul.f32 %v1172, %v1172
    %v1188 = vmul.f32 %v1175, %v1175
    %v1189 = vmul.f32 %v1177, %v1177
    %v1190 = vmul.f32 %v1180, %v1180
    %v1191 = vmul.f32 %v1182, %v1182
    %v1192 = vmul.f32 %v1165, %v1184
    %v1193 = vmul.f32 %v1167, %v1185
    %v1194 = vmul.f32 %v1170, %v1186
    %v1195 = vmul.f32 %v1172, %v1187
    %v1196 = vmul.f32 %v1175, %v1188
    %v1197 = vmul.f32 %v1177, %v1189
    %v1198 = vmul.f32 %v1180, %v1190
    %v1199 = vmul.f32 %v1182, %v1191
    %v1200 = vmul.f32 %v1192, 0.044715
    %v1201 = vmul.f32 %v1193, 0.044715
    %v1202 = vmul.f32 %v1194, 0.044715
    %v1203 = vmul.f32 %v1195, 0.044715
    %v1204 = vmul.f32 %v1196, 0.044715
    %v1205 = vmul.f32 %v1197, 0.044715
    %v1206 = vmul.f32 %v1198, 0.044715
    %v1207 = vmul.f32 %v1199, 0.044715
    %v1208 = vadd.f32 %v1165, %v1200
    %v1209 = vadd.f32 %v1167, %v1201
    %v1210 = vadd.f32 %v1170, %v1202
    %v1211 = vadd.f32 %v1172, %v1203
    %v1212 = vadd.f32 %v1175, %v1204
    %v1213 = vadd.f32 %v1177, %v1205
    %v1214 = vadd.f32 %v1180, %v1206
    %v1215 = vadd.f32 %v1182, %v1207
    %v1216 = vmul.f32 %v1208, 0.7978846
    %v1217 = vmul.f32 %v1209, 0.7978846
    %v1218 = vmul.f32 %v1210, 0.7978846
    %v1219 = vmul.f32 %v1211, 0.7978846
    %v1220 = vmul.f32 %v1212, 0.7978846
    %v1221 = vmul.f32 %v1213, 0.7978846
    %v1222 = vmul.f32 %v1214, 0.7978846
    %v1223 = vmul.f32 %v1215, 0.7978846
    %v1224 = vtanh.pop %v1216
    %v1225 = vtanh.pop %v1217
    %v1226 = vtanh.pop %v1218
    %v1227 = vtanh.pop %v1219
    %v1228 = vtanh.pop %v1220
    %v1229 = vtanh.pop %v1221
    %v1230 = vtanh.pop %v1222
    %v1231 = vtanh.pop %v1223
    %v1232 = vadd.f32 %v1224, 1.0
    %v1233 = vadd.f32 %v1225, 1.0
    %v1234 = vadd.f32 %v1226, 1.0
    %v1235 = vadd.f32 %v1227, 1.0
    %v1236 = vadd.f32 %v1228, 1.0
    %v1237 = vadd.f32 %v1229, 1.0
    %v1238 = vadd.f32 %v1230, 1.0
    %v1239 = vadd.f32 %v1231, 1.0
    %v1240 = vmul.f32 %v1232, 0.5
    %v1241 = vmul.f32 %v1233, 0.5
    %v1242 = vmul.f32 %v1234, 0.5
    %v1243 = vmul.f32 %v1235, 0.5
    %v1244 = vmul.f32 %v1236, 0.5
    %v1245 = vmul.f32 %v1237, 0.5
    %v1246 = vmul.f32 %v1238, 0.5
    %v1247 = vmul.f32 %v1239, 0.5
    %v1248 = vmul.f32 %v1165, %v1240
    %v1249 = vmul.f32 %v1167, %v1241
    %v1250 = vmul.f32 %v1170, %v1242
    %v1251 = vmul.f32 %v1172, %v1243
    %v1252 = vmul.f32 %v1175, %v1244
    %v1253 = vmul.f32 %v1177, %v1245
    %v1254 = vmul.f32 %v1180, %v1246
    %v1255 = vmul.f32 %v1182, %v1247
    %v1256 = vpack.c.bf16 %v1249, %v1248
    %v1257 = vpack.c.bf16 %v1251, %v1250
    %v1258 = vpack.c.bf16 %v1253, %v1252
    %v1259 = vpack.c.bf16 %v1255, %v1254
    %v1260 = vld [vmem:[%s8] sm:$0xf]
    %v1261 = vld [vmem:[%s8 + $0x4] sm:$0xf]
    %v1262 = vld [vmem:[%s8 + $0x8] sm:$0xf]
    %v1263 = vld [vmem:[%s8 + $0xc] sm:$0xf]
    %v1264 = vld [vmem:[%s8 + $0x10] sm:$0xf]
    %v1265 = vld [vmem:[%s8 + $0x14] sm:$0xf]
    %v1266 = vld [vmem:[%s8 + $0x18] sm:$0xf]
    %v1267 = vld [vmem:[%s8 + $0x1c] sm:$0xf]
    %v1268 = vld [vmem:[%s12 + $0x7] sm:$0x1]
    %v1269 = vperm.slane %v1268, 0
    %v1278 = vunpack.c.l.b16 %v1260
    %v1279 = vunpack.c.l.b16 %v1261
    %v1280 = vunpack.c.l.b16 %v1262
    %v1281 = vunpack.c.l.b16 %v1263
    %v1282 = vunpack.c.l.b16 %v1264
    %v1283 = vunpack.c.l.b16 %v1265
    %v1284 = vunpack.c.l.b16 %v1266
    %v1285 = vunpack.c.l.b16 %v1267
    %v1286 = vpack.c.b16 %v1279, %v1278
    %v1287 = vpack.c.b16 %v1281, %v1280
    %v1288 = vpack.c.b16 %v1283, %v1282
    %v1289 = vpack.c.b16 %v1285, %v1284
    %v1295 = vsel %vm708, %v1256, 0
    %v1298 = vsel %vm708, %v1257, 0
    %v1301 = vsel %vm708, %v1258, 0
    %v1304 = vsel %vm708, %v1259, 0
    %1306 = vmatpush.bf16.msra.mxu0 0
    %1307 = vmatpush.bf16.msra.mxu0 0
    %1308 = vmatpush.bf16.msra.mxu0 0
    %1309 = vmatpush.bf16.msra.mxu0 0
    %1310 = vmatpush.bf16.msra.mxu0 %v1289
    %1311 = vmatpush.bf16.msra.mxu0 %v1288
    %1312 = vmatpush.bf16.msra.mxu0 %v1287
    %1313 = vmatpush.bf16.msra.mxu0 %v1286
    %1314 = vmatmul.bf16.gmra.mxu0 %v1295
    %v1315 = vpop.f32.mrf.mxu0
    %v1316 = vadd.f32 %v1269, %v1315
    %v1317 = vpop.f32.mrf.mxu0
    %v1318 = vadd.f32 %v1269, %v1317
    %1319 = vmatmul.bf16.gmra.mxu0 %v1298
    %v1320 = vpop.f32.mrf.mxu0
    %v1321 = vadd.f32 %v1269, %v1320
    %v1322 = vpop.f32.mrf.mxu0
    %v1323 = vadd.f32 %v1269, %v1322
    %1324 = vmatmul.bf16.gmra.mxu0 %v1301
    %v1325 = vpop.f32.mrf.mxu0
    %v1326 = vadd.f32 %v1269, %v1325
    %v1327 = vpop.f32.mrf.mxu0
    %v1328 = vadd.f32 %v1269, %v1327
    %1329 = vmatmul.bf16.gmra.mxu0 %v1304
    %v1330 = vpop.f32.mrf.mxu0
    %v1331 = vadd.f32 %v1269, %v1330
    %v1332 = vpop.f32.mrf.mxu0
    %v1333 = vadd.f32 %v1269, %v1332
    %1334 = vdwg.mxu0
    %v1335 = vadd.f32 %v1113, %v1316
    %v1336 = vadd.f32 %v1114, %v1318
    %v1337 = vadd.f32 %v1115, %v1321
    %v1338 = vadd.f32 %v1116, %v1323
    %v1339 = vadd.f32 %v1117, %v1326
    %v1340 = vadd.f32 %v1118, %v1328
    %v1341 = vadd.f32 %v1119, %v1331
    %v1342 = vadd.f32 %v1120, %v1333
    %v1343 = vsel %vm330, %v1335, 0.0
    %1344 = vadd.xlane.f32.xlu0 %v1343
    %v1345 = vpop.xlane.xlu0 %1344
    %v1346 = vsel %vm330, %v1336, 0.0
    %1347 = vadd.xlane.f32.xlu0 %v1346
    %v1348 = vpop.xlane.xlu0 %1347
    %v1349 = vsel %vm330, %v1337, 0.0
    %1350 = vadd.xlane.f32.xlu0 %v1349
    %v1351 = vpop.xlane.xlu0 %1350
    %v1352 = vsel %vm330, %v1338, 0.0
    %1353 = vadd.xlane.f32.xlu0 %v1352
    %v1354 = vpop.xlane.xlu0 %1353
    %v1355 = vsel %vm330, %v1339, 0.0
    %1356 = vadd.xlane.f32.xlu0 %v1355
    %v1357 = vpop.xlane.xlu0 %1356
    %v1358 = vsel %vm330, %v1340, 0.0
    %1359 = vadd.xlane.f32.xlu0 %v1358
    %v1360 = vpop.xlane.xlu0 %1359
    %v1361 = vsel %vm330, %v1341, 0.0
    %1362 = vadd.xlane.f32.xlu0 %v1361
    %v1363 = vpop.xlane.xlu0 %1362
    %v1364 = vsel %vm330, %v1342, 0.0
    %1365 = vadd.xlane.f32.xlu0 %v1364
    %v1366 = vpop.xlane.xlu0 %1365
    %v1367 = vmul.f32 %v1345, %v361
    %v1368 = vmul.f32 %v1348, %v361
    %v1369 = vmul.f32 %v1351, %v361
    %v1370 = vmul.f32 %v1354, %v361
    %v1371 = vmul.f32 %v1357, %v361
    %v1372 = vmul.f32 %v1360, %v361
    %v1373 = vmul.f32 %v1363, %v361
    %v1374 = vmul.f32 %v1366, %v361
    %v1375 = vsub.f32 %v1335, %v1367
    %v1376 = vsub.f32 %v1336, %v1368
    %v1377 = vsub.f32 %v1337, %v1369
    %v1378 = vsub.f32 %v1338, %v1370
    %v1379 = vsub.f32 %v1339, %v1371
    %v1380 = vsub.f32 %v1340, %v1372
    %v1381 = vsub.f32 %v1341, %v1373
    %v1382 = vsub.f32 %v1342, %v1374
    %v1383 = vmul.f32 %v1375, %v1375
    %v1384 = vmul.f32 %v1376, %v1376
    %v1385 = vmul.f32 %v1377, %v1377
    %v1386 = vmul.f32 %v1378, %v1378
    %v1387 = vmul.f32 %v1379, %v1379
    %v1388 = vmul.f32 %v1380, %v1380
    %v1389 = vmul.f32 %v1381, %v1381
    %v1390 = vmul.f32 %v1382, %v1382
    %v1391 = vsel %vm330, %v1383, 0.0
    %1392 = vadd.xlane.f32.xlu0 %v1391
    %v1393 = vpop.xlane.xlu0 %1392
    %v1394 = vsel %vm330, %v1384, 0.0
    %1395 = vadd.xlane.f32.xlu0 %v1394
    %v1396 = vpop.xlane.xlu0 %1395
    %v1397 = vsel %vm330, %v1385, 0.0
    %1398 = vadd.xlane.f32.xlu0 %v1397
    %v1399 = vpop.xlane.xlu0 %1398
    %v1400 = vsel %vm330, %v1386, 0.0
    %1401 = vadd.xlane.f32.xlu0 %v1400
    %v1402 = vpop.xlane.xlu0 %1401
    %v1403 = vsel %vm330, %v1387, 0.0
    %1404 = vadd.xlane.f32.xlu0 %v1403
    %v1405 = vpop.xlane.xlu0 %1404
    %v1406 = vsel %vm330, %v1388, 0.0
    %1407 = vadd.xlane.f32.xlu0 %v1406
    %v1408 = vpop.xlane.xlu0 %1407
    %v1409 = vsel %vm330, %v1389, 0.0
    %1410 = vadd.xlane.f32.xlu0 %v1409
    %v1411 = vpop.xlane.xlu0 %1410
    %v1412 = vsel %vm330, %v1390, 0.0
    %1413 = vadd.xlane.f32.xlu0 %v1412
    %v1414 = vpop.xlane.xlu0 %1413
    %v1415 = vmul.f32 %v1393, %v361
    %v1416 = vmul.f32 %v1396, %v361
    %v1417 = vmul.f32 %v1399, %v361
    %v1418 = vmul.f32 %v1402, %v361
    %v1419 = vmul.f32 %v1405, %v361
    %v1420 = vmul.f32 %v1408, %v361
    %v1421 = vmul.f32 %v1411, %v361
    %v1422 = vmul.f32 %v1414, %v361
    %v1423 = vadd.f32 %v1415, 1e-12
    %v1424 = vadd.f32 %v1416, 1e-12
    %v1425 = vadd.f32 %v1417, 1e-12
    %v1426 = vadd.f32 %v1418, 1e-12
    %v1427 = vadd.f32 %v1419, 1e-12
    %v1428 = vadd.f32 %v1420, 1e-12
    %v1429 = vadd.f32 %v1421, 1e-12
    %v1430 = vadd.f32 %v1422, 1e-12
    %v1431 = vrsqrt.pop %v1423
    %v1432 = vmul.f32 %v1431, %v1423
    %v1433 = vmul.f32 %v1432, %v1431
    %v1434 = vmul.f32 0.5, %v1433
    %v1435 = vsub.f32 1.5, %v1434
    %v1436 = vmul.f32 %v1431, %v1435
    %vm1437 = vweird.f32 %v1423
    %vm1438 = vweird.f32 %v1431
    %vm1439 = vmor %vm1437, %vm1438
    %v1440 = vsel %vm1439, %v1431, %v1436
    %v1441 = vrsqrt.pop %v1424
    %v1442 = vmul.f32 %v1441, %v1424
    %v1443 = vmul.f32 %v1442, %v1441
    %v1444 = vmul.f32 0.5, %v1443
    %v1445 = vsub.f32 1.5, %v1444
    %v1446 = vmul.f32 %v1441, %v1445
    %vm1447 = vweird.f32 %v1424
    %vm1448 = vweird.f32 %v1441
    %vm1449 = vmor %vm1447, %vm1448
    %v1450 = vsel %vm1449, %v1441, %v1446
    %v1451 = vrsqrt.pop %v1425
    %v1452 = vmul.f32 %v1451, %v1425
    %v1453 = vmul.f32 %v1452, %v1451
    %v1454 = vmul.f32 0.5, %v1453
    %v1455 = vsub.f32 1.5, %v1454
    %v1456 = vmul.f32 %v1451, %v1455
    %vm1457 = vweird.f32 %v1425
    %vm1458 = vweird.f32 %v1451
    %vm1459 = vmor %vm1457, %vm1458
    %v1460 = vsel %vm1459, %v1451, %v1456
    %v1461 = vrsqrt.pop %v1426
    %v1462 = vmul.f32 %v1461, %v1426
    %v1463 = vmul.f32 %v1462, %v1461
    %v1464 = vmul.f32 0.5, %v1463
    %v1465 = vsub.f32 1.5, %v1464
    %v1466 = vmul.f32 %v1461, %v1465
    %vm1467 = vweird.f32 %v1426
    %vm1468 = vweird.f32 %v1461
    %vm1469 = vmor %vm1467, %vm1468
    %v1470 = vsel %vm1469, %v1461, %v1466
    %v1471 = vrsqrt.pop %v1427
    %v1472 = vmul.f32 %v1471, %v1427
    %v1473 = vmul.f32 %v1472, %v1471
    %v1474 = vmul.f32 0.5, %v1473
    %v1475 = vsub.f32 1.5, %v1474
    %v1476 = vmul.f32 %v1471, %v1475
    %vm1477 = vweird.f32 %v1427
    %vm1478 = vweird.f32 %v1471
    %vm1479 = vmor %vm1477, %vm1478
    %v1480 = vsel %vm1479, %v1471, %v1476
    %v1481 = vrsqrt.pop %v1428
    %v1482 = vmul.f32 %v1481, %v1428
    %v1483 = vmul.f32 %v1482, %v1481
    %v1484 = vmul.f32 0.5, %v1483
    %v1485 = vsub.f32 1.5, %v1484
    %v1486 = vmul.f32 %v1481, %v1485
    %vm1487 = vweird.f32 %v1428
    %vm1488 = vweird.f32 %v1481
    %vm1489 = vmor %vm1487, %vm1488
    %v1490 = vsel %vm1489, %v1481, %v1486
    %v1491 = vrsqrt.pop %v1429
    %v1492 = vmul.f32 %v1491, %v1429
    %v1493 = vmul.f32 %v1492, %v1491
    %v1494 = vmul.f32 0.5, %v1493
    %v1495 = vsub.f32 1.5, %v1494
    %v1496 = vmul.f32 %v1491, %v1495
    %vm1497 = vweird.f32 %v1429
    %vm1498 = vweird.f32 %v1491
    %vm1499 = vmor %vm1497, %vm1498
    %v1500 = vsel %vm1499, %v1491, %v1496
    %v1501 = vrsqrt.pop %v1430
    %v1502 = vmul.f32 %v1501, %v1430
    %v1503 = vmul.f32 %v1502, %v1501
    %v1504 = vmul.f32 0.5, %v1503
    %v1505 = vsub.f32 1.5, %v1504
    %v1506 = vmul.f32 %v1501, %v1505
    %vm1507 = vweird.f32 %v1430
    %vm1508 = vweird.f32 %v1501
    %vm1509 = vmor %vm1507, %vm1508
    %v1510 = vsel %vm1509, %v1501, %v1506
    %v1511 = vmul.f32 %v1375, %v1440
    %v1512 = vmul.f32 %v1376, %v1450
    %v1513 = vmul.f32 %v1377, %v1460
    %v1514 = vmul.f32 %v1378, %v1470
    %v1515 = vmul.f32 %v1379, %v1480
    %v1516 = vmul.f32 %v1380, %v1490
    %v1517 = vmul.f32 %v1381, %v1500
    %v1518 = vmul.f32 %v1382, %v1510
    %v1519 = vld [vmem:[%s12 + $0x8] sm:$0x1]
    %v1520 = vperm.slane %v1519, 0
    %v1521 = vmul.f32 %v1511, %v1520
    %v1522 = vmul.f32 %v1512, %v1520
    %v1523 = vmul.f32 %v1513, %v1520
    %v1524 = vmul.f32 %v1514, %v1520
    %v1525 = vmul.f32 %v1515, %v1520
    %v1526 = vmul.f32 %v1516, %v1520
    %v1527 = vmul.f32 %v1517, %v1520
    %v1528 = vmul.f32 %v1518, %v1520
    %v1529 = vld [vmem:[%s12 + $0x9] sm:$0x1]
    %v1530 = vperm.slane %v1529, 0
    %v1531 = vadd.f32 %v1521, %v1530
    %v1532 = vadd.f32 %v1522, %v1530
    %v1533 = vadd.f32 %v1523, %v1530
    %v1534 = vadd.f32 %v1524, %v1530
    %v1535 = vadd.f32 %v1525, %v1530
    %v1536 = vadd.f32 %v1526, %v1530
    %v1537 = vadd.f32 %v1527, %v1530
    %v1538 = vadd.f32 %v1528, %v1530
    %v1539 = vmul.u32 %v675, 8
    %vm1540 = vcmp.eq.s32.totalorder %v63, %v1539
    %v1541 = vsel %vm1540, 1, 0
    %v1542 = vcvt.s32.f32 %v1541
    %v1544 = vsel %vm708, %v1542, 0
    %1546 = vmatpush.msra.mxu0 0.0
    %1547 = vmatpush.msra.mxu0 0.0
    %1548 = vmatpush.msra.mxu0 0.0
    %1549 = vmatpush.msra.mxu0 0.0
    %1550 = vmatpush.msra.mxu0 0.0
    %1551 = vmatpush.msra.mxu0 0.0
    %1552 = vmatpush.msra.mxu0 0.0
    %1553 = vmatpush.msra.mxu0 0.0
    %1554 = vmatpush.msra.mxu0 %v1538
    %1555 = vmatpush.msra.mxu0 %v1537
    %1556 = vmatpush.msra.mxu0 %v1536
    %1557 = vmatpush.msra.mxu0 %v1535
    %1558 = vmatpush.msra.mxu0 %v1534
    %1559 = vmatpush.msra.mxu0 %v1533
    %1560 = vmatpush.msra.mxu0 %v1532
    %1561 = vmatpush.msra.mxu0 %v1531
    %1562 = vmatmul.f32.gmra.mxu0 %v1544
    %v1563 = vpop.f32.mrf.mxu0
    %v1564 = vadd.f32 0.0, %v1563
    %1565 = vdwg.mxu0
    %v1566 = vpack.c.bf16 %v1564, %v1564
    %v1567 = vld [vmem:[%s9] sm:$0xf]
    %v1568 = vld [vmem:[%s9 + $0x4] sm:$0xf]
    %v1569 = vld [vmem:[%s9 + $0x8] sm:$0xf]
    %v1570 = vld [vmem:[%s9 + $0xc] sm:$0xf]
    %v1571 = vld [vmem:[%s12 + $0xa] sm:$0x1]
    %v1572 = vperm.slane %v1571, 0
    %v1577 = vunpack.c.l.b16 %v1567
    %v1578 = vunpack.c.l.b16 %v1568
    %v1579 = vunpack.c.l.b16 %v1569
    %v1580 = vunpack.c.l.b16 %v1570
    %v1581 = vpack.c.b16 %v1578, %v1577
    %v1582 = vpack.c.b16 %v1580, %v1579
    %v1586 = vsel %vm330, %v1566, 0
    %1588 = vmatpush.bf16.msra.mxu0 0
    %1589 = vmatpush.bf16.msra.mxu0 0
    %1590 = vmatpush.bf16.msra.mxu0 0
    %1591 = vmatpush.bf16.msra.mxu0 0
    %1592 = vmatpush.bf16.msra.mxu0 0
    %1593 = vmatpush.bf16.msra.mxu0 0
    %1594 = vmatpush.bf16.msra.mxu0 %v1582
    %1595 = vmatpush.bf16.msra.mxu0 %v1581
    %1596 = vmatmul.bf16.gmra.mxu0 %v1586
    %v1597 = vpop.f32.mrf.mxu0
    %v1598 = vadd.f32 %v1572, %v1597
    %v1599 = vpop.f32.mrf.mxu0
    %1600 = vdwg.mxu0
    %v1601 = vtanh.pop %v1598
    %v1602 = vld [vmem:[%s10] sm:$0xff]
    %v1603 = vld [vmem:[%s10 + $0x8] sm:$0xff]
    %v1604 = vld [vmem:[%s10 + $0x10] sm:$0xff]
    %v1605 = vld [vmem:[%s10 + $0x18] sm:$0xff]
    %v1606 = vld [vmem:[%s12 + $0xb] sm:$0x1]
    %v1607 = vperm.slane %v1606, 0
    %v1609 = vsel %vm330, %v1601, 0
    %1611 = vmatpush.msra.mxu0 0.0
    %1612 = vmatpush.msra.mxu0 0.0
    %1613 = vmatpush.msra.mxu0 0.0
    %1614 = vmatpush.msra.mxu0 0.0
    %1615 = vmatpush.msra.mxu0 0.0
    %1616 = vmatpush.msra.mxu0 0.0
    %1617 = vmatpush.msra.mxu0 0.0
    %1618 = vmatpush.msra.mxu0 0.0
    %1619 = vmatpush.msra.mxu0 0.0
    %1620 = vmatpush.msra.mxu0 0.0
    %1621 = vmatpush.msra.mxu0 0.0
    %1622 = vmatpush.msra.mxu0 0.0
    %1623 = vmatpush.msra.mxu0 %v1605
    %1624 = vmatpush.msra.mxu0 %v1604
    %1625 = vmatpush.msra.mxu0 %v1603
    %1626 = vmatpush.msra.mxu0 %v1602
    %1627 = vmatmul.f32.gmra.mxu0 %v1609
    %v1628 = vpop.f32.mrf.mxu0
    %v1629 = vadd.f32 %v1607, %v1628
    %1630 = vdwg.mxu0
    %v1631 = vsel %vm174, %v1629, -inf
    %1632 = vmax.xlane.f32.xlu0 %v1631
    %v1633 = vpop.xlane.xlu0 %1632
    %v1634 = vsub.f32 %v1629, %v1633
    %v1635 = vmul.f32 %v1634, 1.442695
    %v1636 = vpow.pop %v1635
    %v1637 = vsel %vm174, %v1636, 0.0
    %1638 = vadd.xlane.f32.xlu0 %v1637
    %v1639 = vpop.xlane.xlu0 %1638
    %v1640 = vrcp.pop %v1639
    %v1641 = vmul.f32 %v1639, %v1640
    %v1642 = vsub.f32 1.0, %v1641
    %v1643 = vmul.f32 %v1640, %v1642
    %v1644 = vadd.f32 %v1640, %v1643
    %vm1645 = vweird.f32 %v1639
    %vm1646 = vweird.f32 %v1640
    %vm1647 = vmor %vm1645, %vm1646
    %v1648 = vsel %vm1647, %v1640, %v1644
    %v1649 = vand.u32 2147483647, %v1639
    %vm1650 = vcmp.eq.f32.partialorder %v1649, 8.507059e+37
    %v1651 = vand.u32 %v1639, 2147483648
    %v1652 = vor.u32 1.1754944e-38, %v1651
    %v1653 = vsel %vm1650, %v1652, %v1648
    %v1654 = vmul.f32 %v1636, %v1653
    %v1655 = vld [vmem:[%s11] sm:$0xff]
    %v1656 = vld [vmem:[%s12 + $0xc] sm:$0x1]
    %v1658 = vsel %vm174, %v1654, 0
    %v1661 = vsel %vm199, %v1655, 0
    %1663 = vmatpush.msra.mxu0 0.0
    %1664 = vmatpush.msra.mxu0 0.0
    %1665 = vmatpush.msra.mxu0 0.0
    %1666 = vmatpush.msra.mxu0 0.0
    %1667 = vmatpush.msra.mxu0 0.0
    %1668 = vmatpush.msra.mxu0 0.0
    %1669 = vmatpush.msra.mxu0 0.0
    %1670 = vmatpush.msra.mxu0 0.0
    %1671 = vmatpush.msra.mxu0 0.0
    %1672 = vmatpush.msra.mxu0 0.0
    %1673 = vmatpush.msra.mxu0 0.0
    %1674 = vmatpush.msra.mxu0 0.0
    %1675 = vmatpush.msra.mxu0 0.0
    %1676 = vmatpush.msra.mxu0 0.0
    %1677 = vmatpush.msra.mxu0 0.0
    %1678 = vmatpush.msra.mxu0 %v1661
    %1679 = vmatmul.f32.gmra.mxu0 %v1658
    %v1680 = vpop.f32.mrf.mxu0
    %v1681 = vadd.f32 0.0, %v1680
    %1682 = vdwg.mxu0
    %v1683 = vperm.slane %v1656, 0
    %v1684 = vadd.f32 %v1683, %v1681
    %v1685 = vrot.slane %v1654, 2
    %v1686 = vrot.slane %v1655, 2
    %v1687 = vsel %vm174, %v1685, 0
    %v1689 = vsel %vm199, %v1686, 0
    %1691 = vmatpush.msra.mxu0 0.0
    %1692 = vmatpush.msra.mxu0 0.0
    %1693 = vmatpush.msra.mxu0 0.0
    %1694 = vmatpush.msra.mxu0 0.0
    %1695 = vmatpush.msra.mxu0 0.0
    %1696 = vmatpush.msra.mxu0 0.0
    %1697 = vmatpush.msra.mxu0 0.0
    %1698 = vmatpush.msra.mxu0 0.0
    %1699 = vmatpush.msra.mxu0 0.0
    %1700 = vmatpush.msra.mxu0 0.0
    %1701 = vmatpush.msra.mxu0 0.0
    %1702 = vmatpush.msra.mxu0 0.0
    %1703 = vmatpush.msra.mxu0 0.0
    %1704 = vmatpush.msra.mxu0 0.0
    %1705 = vmatpush.msra.mxu0 0.0
    %1706 = vmatpush.msra.mxu0 %v1689
    %1707 = vmatmul.f32.gmra.mxu0 %v1687
    %v1708 = vpop.f32.mrf.mxu0
    %v1709 = vadd.f32 0.0, %v1708
    %1710 = vdwg.mxu0
    %v1711 = vadd.f32 %v1684, %v1709
    %v1712 = vrot.slane %v1654, 4
    %v1713 = vrot.slane %v1655, 4
    %v1714 = vsel %vm174, %v1712, 0
    %v1716 = vsel %vm199, %v1713, 0
    %1718 = vmatpush.msra.mxu0 0.0
    %1719 = vmatpush.msra.mxu0 0.0
    %1720 = vmatpush.msra.mxu0 0.0
    %1721 = vmatpush.msra.mxu0 0.0
    %1722 = vmatpush.msra.mxu0 0.0
    %1723 = vmatpush.msra.mxu0 0.0
    %1724 = vmatpush.msra.mxu0 0.0
    %1725 = vmatpush.msra.mxu0 0.0
    %1726 = vmatpush.msra.mxu0 0.0
    %1727 = vmatpush.msra.mxu0 0.0
    %1728 = vmatpush.msra.mxu0 0.0
    %1729 = vmatpush.msra.mxu0 0.0
    %1730 = vmatpush.msra.mxu0 0.0
    %1731 = vmatpush.msra.mxu0 0.0
    %1732 = vmatpush.msra.mxu0 0.0
    %1733 = vmatpush.msra.mxu0 %v1716
    %1734 = vmatmul.f32.gmra.mxu0 %v1714
    %v1735 = vpop.f32.mrf.mxu0
    %v1736 = vadd.f32 0.0, %v1735
    %1737 = vdwg.mxu0
    %v1738 = vadd.f32 %v1711, %v1736
    %v1739 = vrot.slane %v1654, 6
    %v1740 = vrot.slane %v1655, 6
    %v1741 = vsel %vm174, %v1739, 0
    %v1743 = vsel %vm199, %v1740, 0
    %1745 = vmatpush.msra.mxu0 0.0
    %1746 = vmatpush.msra.mxu0 0.0
    %1747 = vmatpush.msra.mxu0 0.0
    %1748 = vmatpush.msra.mxu0 0.0
    %1749 = vmatpush.msra.mxu0 0.0
    %1750 = vmatpush.msra.mxu0 0.0
    %1751 = vmatpush.msra.mxu0 0.0
    %1752 = vmatpush.msra.mxu0 0.0
    %1753 = vmatpush.msra.mxu0 0.0
    %1754 = vmatpush.msra.mxu0 0.0
    %1755 = vmatpush.msra.mxu0 0.0
    %1756 = vmatpush.msra.mxu0 0.0
    %1757 = vmatpush.msra.mxu0 0.0
    %1758 = vmatpush.msra.mxu0 0.0
    %1759 = vmatpush.msra.mxu0 0.0
    %1760 = vmatpush.msra.mxu0 %v1743
    %1761 = vmatmul.f32.gmra.mxu0 %v1741
    %v1762 = vpop.f32.mrf.mxu0
    %v1763 = vadd.f32 0.0, %v1762
    %1764 = vdwg.mxu0
    %v1765 = vadd.f32 %v1738, %v1763
    %vm1766 = vcmask 25600
    %v1767 = vsel %vm1766, %v1765, -inf
    %1768 = vmax.xlane.f32.xlu0 %v1767
    %v1769 = vpop.xlane.xlu0 %1768
    %v1770 = vsub.f32 %v1765, %v1769
    %v1771 = vmul.f32 %v1770, 1.442695
    %v1772 = vpow.pop %v1771
    %v1773 = vsel %vm1766, %v1772, 0.0
    %1774 = vadd.xlane.f32.xlu0 %v1773
    %v1775 = vpop.xlane.xlu0 %1774
    %v1776 = vrcp.pop %v1775
    %v1777 = vmul.f32 %v1775, %v1776
    %v1778 = vsub.f32 1.0, %v1777
    %v1779 = vmul.f32 %v1776, %v1778
    %v1780 = vadd.f32 %v1776, %v1779
    %vm1781 = vweird.f32 %v1775
    %vm1782 = vweird.f32 %v1776
    %vm1783 = vmor %vm1781, %vm1782
    %v1784 = vsel %vm1783, %v1776, %v1780
    %v1785 = vand.u32 2147483647, %v1775
    %vm1786 = vcmp.eq.f32.partialorder %v1785, 8.507059e+37
    %v1787 = vand.u32 %v1775, 2147483648
    %v1788 = vor.u32 1.1754944e-38, %v1787
    %v1789 = vsel %vm1786, %v1788, %v1784
    %v1790 = vmul.f32 %v1772, %v1789
    %1791 = vst [vmem:[#allocation2] sm:$0xff] 0.0
    %v1793 = vrot.slane %v1790, 6
    %v1795 = vsel %vm199, %v1765, %v1793
    %vm1796 = vcmask 27648
    %1797 = vst.msk [vmem:[#allocation2] sm:$0xf] %vm1796, %v1795
    // Predicated region
    $region54: #{tpu_custom_call.1} parent=1 // pred_check
      _
    $region55: #{tpu_custom_call.1} parent=1 // pred_check_branch
      %1799 = sbr.rel (0) target = $region57
    $region56: #{tpu_custom_call.1} parent=1 // pred_region
      %1801 = vsyncadd [#allocation3], 0
      %s1803 = sshll.u32 [#allocation2], 4
      %s1804 = int_to_ptr.vmem [resolvable:$true] %s1803
      %s1805 = sshll.u32 %s13, 4
      %s1806 = int_to_ptr.hbm [resolvable:$true] %s1805
      %1808 = dma.vmem_to_hbm [thread:$0]  %s1804, 128, %s1806, [#allocation3]
    $region57: #{tpu_custom_call.1} parent=1 // pred_fallthru
      _
    // Predicated region
    $region58: #{tpu_custom_call.1} parent=1 // pred_check
      _
    $region59: #{tpu_custom_call.1} parent=1 // pred_check_branch
      %1810 = sbr.rel (0) target = $region61
    $region60: #{tpu_custom_call.1} parent=1 // pred_region
      %1812 = dma.done [#allocation3], 128
    $region61: #{tpu_custom_call.1} parent=1 // pred_fallthru
      _
    %1813 = vsyncpa [#allocation3], 1

</llo_original>
